<compile_context>
chip_gen: v5e
topology: v5e:2x2
jax: 0.10.0
libtpu: 0.0.40
codegen_flags: <defaults>
</compile_context>

<pallas_src>
import functools
import jax
import jax.numpy as jnp
from jax.experimental import pallas as pl
from jax.experimental.pallas import tpu as pltpu

BATCH = 2
NODE_COUNT = 8
STATE_SIZE = 2          # position=False -> x = data.x[:, :2]
HID = 16                # each HybridConv layer outputs 16 (lin) + 16 (gat)


def _round8(v):
    return max(8, -(-v // 8) * 8)


def _w_offsets(n):
    """Row offsets inside the packed weight slab (all 8-aligned)."""
    na = _round8(n)
    o = {}
    r = 0
    o["WC"] = r;   r += 4 * 32      # Wcomb  [32,32] per layer (lin | gat-lin)
    o["AD"] = r;   r += 4 * 32      # att_dst, lane-replicated [32,N] per layer
    o["AS"] = r;   r += 4 * na      # att_src, row-replicated  [N,32] per layer
    o["BC"] = r;   r += 4 * 8       # fused bias row [blin | bgat] per layer
    o["WWA"] = r;  r += 8           # weighting_attention weight row [1,32]
    o["WA1A"] = r; r += 32          # a1 weight acting on x_combined   [32,32]
    o["WA1B"] = r; r += 32          # a1 weight acting on graph_embed  [32,32]
    o["BA1"] = r;  r += 8           # a1 bias [1,32]
    o["WA2"] = r;  r += 8           # a2 weight row [1,32]
    o["WV1"] = r;  r += 32          # v1 weight [32,16]
    o["BV1"] = r;  r += 8           # v1 bias [1,16]
    o["WV2"] = r;  r += 8           # v2 weight row [1,16]
    o["ROWS"] = r
    o["NA"] = na
    return o


# ----------------------------------------------------------------------------
# Pallas kernel: the entire forward pass in a single grid-less invocation.
# ----------------------------------------------------------------------------
def hybrid_kernel(dslab_ref, wslab_ref, scal_ref, out_ref, *, n, b, node_count):
    f32 = jnp.float32
    N, B = n, b
    o = _w_offsets(N)
    na = o["NA"]

    # ---- dynamic slab (static ref slices are free) ----
    X = dslab_ref[0:N, :]                         # [N,32] fused [x_lin | x_conv]
    Mv = dslab_ref[N:2 * N, 0:N]                  # adjacency incl. self loops
    E0v = dslab_ref[2 * N:3 * N, 0:N]             # edge attr channel 0
    E1v = dslab_ref[3 * N:4 * N, 0:N]             # edge attr channel 1
    SsumT = dslab_ref[4 * N:5 * N, 0:B]           # [N,B] graph membership^T
    Ssum = dslab_ref[5 * N:5 * N + B, 0:N]        # [B,N] graph membership

    edge_mask = Mv > 0.0
    lane = jax.lax.broadcasted_iota(jnp.int32, (N, 32), 1)
    keep_lin = lane < 16                          # lanes 0:16 = Linear branch

    # ---- 4 hybrid layers, statically unrolled ----
    for l in range(4):
        Wc = wslab_ref[o["WC"] + 32 * l:o["WC"] + 32 * (l + 1), :]       # [32,32]
        Ad = wslab_ref[o["AD"] + 32 * l:o["AD"] + 32 * (l + 1), 0:N]     # [32,N]
        As = wslab_ref[o["AS"] + na * l:o["AS"] + na * l + N, :]         # [N,32]
        Bc = wslab_ref[o["BC"] + 8 * l:o["BC"] + 8 * l + 1, :]           # [1,32]
        w0 = scal_ref[2 + 2 * l]                                         # edge weights
        w1 = scal_ref[3 + 2 * l]

        # single fused input matmul: lanes 0:16 = Linear(x_lin),
        # lanes 16:32 = GAT lin(cat[x_lin, x_conv]).
        comb = jnp.dot(X, Wc, preferred_element_type=f32)                # [N,32]

        # both attention-logit planes straight out of the MXU (no relayout):
        adst = jnp.dot(comb, Ad, preferred_element_type=f32)             # [i,j]=a_dst.h_i
        asrc = jax.lax.dot_general(As, comb, (((1,), (1,)), ((), ())),
                                   preferred_element_type=f32)           # [i,j]=a_src.h_j

        raw = adst + asrc + (w0 * E0v + w1 * E1v)                        # + a_e.lin_e(e_ij)
        lrelu = jnp.where(raw >= 0.0, raw, 0.2 * raw)                    # leaky_relu(0.2)
        logits = jnp.where(edge_mask, lrelu, f32(-1e30))                 # softmax over edges
        p = jnp.exp(logits - jnp.max(logits, axis=-1, keepdims=True))
        attn = p * pl.reciprocal(jnp.sum(p, axis=-1, keepdims=True), approx=True)

        conv = jnp.dot(attn, comb, preferred_element_type=f32)           # lanes 16:32 valid
        # disjoint lanes: one select + one add + one relu fuses both branches
        X = jnp.maximum(jnp.where(keep_lin, comb, conv) + Bc, 0.0)       # [N,32]

    # ---- per-graph softmax attention pooling ----
    # (weighting_attention bias is constant per node -> cancels in softmax)
    WwaT = wslab_ref[o["WWA"]:o["WWA"] + 1, :]                           # [1,32]
    wrow = jax.lax.dot_general(WwaT, X, (((1,), (1,)), ((), ())),
                               preferred_element_type=f32)               # [1,N]
    same_graph = jnp.dot(SsumT, Ssum, preferred_element_type=f32) > 0.0  # [N,N]
    scores = jnp.where(same_graph, jnp.broadcast_to(wrow, (N, N)), f32(-1e30))
    pe = jnp.exp(scores - jnp.max(scores, axis=-1, keepdims=True))       # per-graph max
    alpha = pe * pl.reciprocal(jnp.sum(pe, axis=-1, keepdims=True), approx=True)
    ge_exp = jnp.dot(alpha, X, preferred_element_type=f32)               # [N,32] per node
    ge = jnp.dot(Ssum, ge_exp, preferred_element_type=f32) * (1.0 / node_count)  # [B,32]

    # ---- advantage head: a2(relu(a1(cat[x_combined, graph_emb_expanded]))) ----
    Wa1a = wslab_ref[o["WA1A"]:o["WA1A"] + 32, :]
    Wa1b = wslab_ref[o["WA1B"]:o["WA1B"] + 32, :]
    ba1 = wslab_ref[o["BA1"]:o["BA1"] + 1, :]
    Wa2 = wslab_ref[o["WA2"]:o["WA2"] + 1, :]
    a = jnp.maximum(jnp.dot(X, Wa1a, preferred_element_type=f32)
                    + jnp.dot(ge_exp, Wa1b, preferred_element_type=f32)
                    + ba1, 0.0)                                          # [N,32]
    xadv = jax.lax.dot_general(Wa2, a, (((1,), (1,)), ((), ())),
                               preferred_element_type=f32) + scal_ref[0]  # [1,N]

    # ---- value head: v2(relu(v1(graph_embedding))) ----
    Wv1 = wslab_ref[o["WV1"]:o["WV1"] + 32, 0:16]
    bv1 = wslab_ref[o["BV1"]:o["BV1"] + 1, 0:16]
    Wv2 = wslab_ref[o["WV2"]:o["WV2"] + 1, 0:16]
    v = jnp.maximum(jnp.dot(ge, Wv1, preferred_element_type=f32) + bv1, 0.0)   # [B,16]
    vrow = jax.lax.dot_general(Wv2, v, (((1,), (1,)), ((), ())),
                               preferred_element_type=f32) + scal_ref[1]       # [1,B]

    # lane-dense output slab; wrapper only reads [0,:N] and [1,:B]
    out_ref[0:1, 0:N] = xadv
    out_ref[1:2, 0:B] = vrow


# ----------------------------------------------------------------------------
# Wrapper: pack the dynamic inputs into one small slab, single pallas_call.
# ----------------------------------------------------------------------------
@functools.partial(jax.jit, static_argnames=("node_count",))
def hybrid_network_global(x, M, E0, E1, Ssum, wslab, scal, node_count):
    N = x.shape[0]
    B = Ssum.shape[0]
    S = x.shape[1]
    assert N <= 32, "dense-graph formulation packs N x N planes into 32 lanes"

    rows_d = 5 * N + _round8(B)
    dslab = jnp.zeros((rows_d, 32), jnp.float32)
    dslab = dslab.at[0:N, 0:S].set(x)                 # x_lin
    dslab = dslab.at[0:N, 16:16 + S].set(x)           # x_conv (= x for layer 1)
    dslab = dslab.at[N:2 * N, 0:N].set(M)
    dslab = dslab.at[2 * N:3 * N, 0:N].set(E0)
    dslab = dslab.at[3 * N:4 * N, 0:N].set(E1)
    dslab = dslab.at[4 * N:5 * N, 0:B].set(Ssum.T)
    dslab = dslab.at[5 * N:5 * N + B, 0:N].set(Ssum)

    kern = functools.partial(hybrid_kernel, n=N, b=B, node_count=node_count)
    vmem = pl.BlockSpec(memory_space=pltpu.MemorySpace.VMEM)
    smem = pl.BlockSpec(memory_space=pltpu.MemorySpace.SMEM)

    # Grid-less: whole problem (~100 KiB) lives in VMEM; 3 input DMAs total.
    out = pl.pallas_call(
        kern,
        out_shape=jax.ShapeDtypeStruct((2, 128), jnp.float32),
        in_specs=[vmem, vmem, smem],
        out_specs=vmem,
    )(dslab, wslab, scal)

    X = out[0, :N].reshape(-1, node_count)            # x.view(-1, node_count)
    V = out[1, :B].reshape(B, 1)
    return X, V


# ----------------------------------------------------------------------------
# Parameter init: deterministic weights packed once into the weight slab.
# ----------------------------------------------------------------------------
def init_params(key):
    N = BATCH * NODE_COUNT
    o = _w_offsets(N)
    na = o["NA"]
    keys = iter(jax.random.split(key, 64))
    nxt = lambda: next(keys)
    rnd = lambda shape: 0.2 * jax.random.normal(nxt(), shape, jnp.float32)

    wslab = jnp.zeros((o["ROWS"], 32), jnp.float32)
    scal = jnp.zeros((16,), jnp.float32)

    in_feats = [STATE_SIZE, HID, HID, HID]            # h1..h4 in_features
    for l, fin in enumerate(in_feats):
        Wl = rnd((16, fin)); bl = rnd((16,))          # nn.Linear(fin, 16)
        Wg = rnd((16, 2 * fin))                       # GATConv.lin (bias=False)
        a_s = rnd((16,)); a_d = rnd((16,))            # att_src / att_dst
        We = rnd((16, 2)); a_e = rnd((16,))           # lin_edge / att_edge
        bg = rnd((16,))                               # GATConv.bias

        # merged Wcomb: Linear -> lanes 0:16, GAT lin(cat) -> lanes 16:32
        Wc = jnp.zeros((32, 32), jnp.float32)
        Wc = Wc.at[0:fin, 0:16].set(Wl.T)
        Wc = Wc.at[0:fin, 16:32].set(Wg[:, :fin].T)
        Wc = Wc.at[16:16 + fin, 16:32].set(Wg[:, fin:].T)
        wslab = wslab.at[o["WC"] + 32 * l:o["WC"] + 32 * (l + 1), :].set(Wc)

        # att_dst replicated across lanes -> MXU emits the [N,N] plane directly
        wslab = wslab.at[o["AD"] + 32 * l + 16:o["AD"] + 32 * (l + 1), 0:N].set(
            jnp.broadcast_to(a_d[:, None], (16, N)))
        # att_src replicated across rows
        wslab = wslab.at[o["AS"] + na * l:o["AS"] + na * l + N, 16:32].set(
            jnp.broadcast_to(a_s[None, :], (N, 16)))
        # fused bias row [blin | bgat]
        wslab = wslab.at[o["BC"] + 8 * l, 0:16].set(bl)
        wslab = wslab.at[o["BC"] + 8 * l, 16:32].set(bg)
        # att_edge . lin_edge(e)  ==  e . (We^T @ a_e)
        wedge = We.T @ a_e
        scal = scal.at[2 + 2 * l].set(wedge[0])
        scal = scal.at[3 + 2 * l].set(wedge[1])

    Wwa = rnd((1, 32)); _bwa = rnd((1,))   # bias cancels inside per-graph softmax
    Wa1 = rnd((32, 64)); ba1 = rnd((32,))
    Wa2 = rnd((1, 32)); ba2 = rnd((1,))
    Wv1 = rnd((16, 32)); bv1 = rnd((16,))
    Wv2 = rnd((1, 16)); bv2 = rnd((1,))

    wslab = wslab.at[o["WWA"], :].set(Wwa[0])
    wslab = wslab.at[o["WA1A"]:o["WA1A"] + 32, :].set(Wa1[:, 0:32].T)
    wslab = wslab.at[o["WA1B"]:o["WA1B"] + 32, :].set(Wa1[:, 32:64].T)
    wslab = wslab.at[o["BA1"], :].set(ba1)
    wslab = wslab.at[o["WA2"], :].set(Wa2[0])
    wslab = wslab.at[o["WV1"]:o["WV1"] + 32, 0:16].set(Wv1.T)
    wslab = wslab.at[o["BV1"], 0:16].set(bv1)
    wslab = wslab.at[o["WV2"], 0:16].set(Wv2[0])
    scal = scal.at[0].set(ba2[0])
    scal = scal.at[1].set(bv2[0])
    return wslab, scal


# ----------------------------------------------------------------------------
# Dense graph construction exactly mirroring the torch forward:
#   edge_index := cat([edge_index, edge_index.flip(0)]),
#   edge_attr  := cat([edge_attr[:, :2], -edge_attr[:, :2]]),
#   then GATConv add_self_loops(fill_value='mean').
# ----------------------------------------------------------------------------
def build_graph(key, batch, node_count):
    N = batch * node_count
    src, dst = [], []
    for b in range(batch):
        for k in range(node_count):
            src.append(b * node_count + k)
            dst.append(b * node_count + (k + 1) % node_count)
    src = jnp.array(src, jnp.int32)
    dst = jnp.array(dst, jnp.int32)
    edge_attr = jax.random.normal(key, (src.shape[0], 3), jnp.float32)[:, :2]

    src2 = jnp.concatenate([src, dst])
    dst2 = jnp.concatenate([dst, src])
    ea2 = jnp.concatenate([edge_attr, -edge_attr], axis=0)

    M = jnp.zeros((N, N), jnp.float32).at[dst2, src2].set(1.0)        # [target, source]
    Ed = jnp.zeros((N, N, 2), jnp.float32).at[dst2, src2, :].set(ea2)

    deg = M.sum(axis=1, keepdims=True)
    loop_attr = Ed.sum(axis=1) / jnp.maximum(deg, 1.0)                # fill_value='mean'
    idx = jnp.arange(N)
    M = M.at[idx, idx].set(1.0)
    Ed = Ed.at[idx, idx, :].set(loop_attr)
    return M, Ed[..., 0], Ed[..., 1]


if __name__ == "__main__":
    key = jax.random.PRNGKey(0)
    k_x, k_e, k_p = jax.random.split(key, 3)

    N = BATCH * NODE_COUNT
    data_x = jax.random.normal(k_x, (N, 4), dtype=jnp.float32)
    x = data_x[:, :STATE_SIZE]                    # position=False, remove_index=False

    M, E0, E1 = build_graph(k_e, BATCH, NODE_COUNT)
    Ssum = (jnp.arange(N)[None, :] // NODE_COUNT
            == jnp.arange(BATCH)[:, None]).astype(jnp.float32)        # [B, N]

    wslab, scal = init_params(k_p)

    X, V = hybrid_network_global(x, M, E0, E1, Ssum, wslab, scal, NODE_COUNT)
    jax.block_until_ready((X, V))

    assert X.shape == (BATCH, NODE_COUNT) and V.shape == (BATCH, 1)
    assert bool(jnp.all(jnp.isfinite(X))) and bool(jnp.all(jnp.isfinite(V)))
    # TODO(synk): GATConv assumed with PyG defaults (heads=1, dropout=0); multi-head
    # variants would need the dense attention replicated per head.
    print("KERNEL_OK")
</pallas_src>

<mosaic_0001>
module attributes {stable_mosaic.version = 11 : i64} {
  func.func @hybrid_kernel(%arg0: memref<88x32xf32, #tpu.memory_space<vmem>>, %arg1: memref<488x32xf32, #tpu.memory_space<vmem>>, %arg2: memref<16xf32, #tpu.memory_space<smem>>, %arg3: memref<2x128xf32, #tpu.memory_space<vmem>>) attributes {dimension_semantics = [], scalar_prefetch = 0 : i64, scratch_operands = 0 : i64, tpu.core_type = #tpu.core_type<tc>} {
    %c0 = arith.constant 0 : index
    %c0_0 = arith.constant 0 : index
    %0 = vector.load %arg0[%c0, %c0_0] : memref<88x32xf32, #tpu.memory_space<vmem>>, vector<16x32xf32>
    %c16 = arith.constant 16 : index
    %c0_1 = arith.constant 0 : index
    %1 = vector.load %arg0[%c16, %c0_1] : memref<88x32xf32, #tpu.memory_space<vmem>>, vector<16x16xf32>
    %c32 = arith.constant 32 : index
    %c0_2 = arith.constant 0 : index
    %2 = vector.load %arg0[%c32, %c0_2] : memref<88x32xf32, #tpu.memory_space<vmem>>, vector<16x16xf32>
    %c48 = arith.constant 48 : index
    %c0_3 = arith.constant 0 : index
    %3 = vector.load %arg0[%c48, %c0_3] : memref<88x32xf32, #tpu.memory_space<vmem>>, vector<16x16xf32>
    %c64 = arith.constant 64 : index
    %c0_4 = arith.constant 0 : index
    %4 = vector.load %arg0[%c64, %c0_4] : memref<88x32xf32, #tpu.memory_space<vmem>>, vector<16x2xf32>
    %c80 = arith.constant 80 : index
    %c0_5 = arith.constant 0 : index
    %5 = vector.load %arg0[%c80, %c0_5] : memref<88x32xf32, #tpu.memory_space<vmem>>, vector<2x16xf32>
    %cst = arith.constant 0.000000e+00 : f32
    %6 = vector.broadcast %cst : f32 to vector<16x16xf32>
    %7 = arith.cmpf ogt, %1, %6 : vector<16x16xf32>
    %8 = tpu.iota {dimensions = array<i32: 1>} : vector<16x32xi32>
    %c16_i32 = arith.constant 16 : i32
    %9 = vector.broadcast %c16_i32 : i32 to vector<16x32xi32>
    %10 = arith.cmpi slt, %8, %9 : vector<16x32xi32>
    %c0_6 = arith.constant 0 : index
    %c0_7 = arith.constant 0 : index
    %11 = vector.load %arg1[%c0_6, %c0_7] : memref<488x32xf32, #tpu.memory_space<vmem>>, vector<32x32xf32>
    %c128 = arith.constant 128 : index
    %c0_8 = arith.constant 0 : index
    %12 = vector.load %arg1[%c128, %c0_8] : memref<488x32xf32, #tpu.memory_space<vmem>>, vector<32x16xf32>
    %c256 = arith.constant 256 : index
    %c0_9 = arith.constant 0 : index
    %13 = vector.load %arg1[%c256, %c0_9] : memref<488x32xf32, #tpu.memory_space<vmem>>, vector<16x32xf32>
    %c320 = arith.constant 320 : index
    %c0_10 = arith.constant 0 : index
    %14 = vector.load %arg1[%c320, %c0_10] : memref<488x32xf32, #tpu.memory_space<vmem>>, vector<1x32xf32>
    %c2 = arith.constant 2 : index
    %15 = memref.load %arg2[%c2] : memref<16xf32, #tpu.memory_space<smem>>
    %c3 = arith.constant 3 : index
    %16 = memref.load %arg2[%c3] : memref<16xf32, #tpu.memory_space<smem>>
    %cst_11 = arith.constant dense<0.000000e+00> : vector<16x32xf32>
    %17 = tpu.matmul %0, %11, %cst_11 {dimension_numbers = #tpu.dot_dimension_numbers<[1], [0], [0], [1], [0, 0, 1, 1], [], []>} : vector<16x32xf32>, vector<32x32xf32>, vector<16x32xf32> -> vector<16x32xf32>
    %cst_12 = arith.constant dense<0.000000e+00> : vector<16x16xf32>
    %18 = tpu.matmul %17, %12, %cst_12 {dimension_numbers = #tpu.dot_dimension_numbers<[1], [0], [0], [1], [0, 0, 1, 1], [], []>} : vector<16x32xf32>, vector<32x16xf32>, vector<16x16xf32> -> vector<16x16xf32>
    %cst_13 = arith.constant dense<0.000000e+00> : vector<16x16xf32>
    %19 = tpu.matmul %13, %17, %cst_13 {dimension_numbers = #tpu.dot_dimension_numbers<[1], [1], [0], [0], [0, 0, 1, 0], [], []>} : vector<16x32xf32>, vector<16x32xf32>, vector<16x16xf32> -> vector<16x16xf32>
    %20 = arith.addf %18, %19 : vector<16x16xf32>
    %21 = vector.broadcast %15 : f32 to vector<16x16xf32>
    %22 = arith.mulf %21, %2 : vector<16x16xf32>
    %23 = vector.broadcast %16 : f32 to vector<16x16xf32>
    %24 = arith.mulf %23, %3 : vector<16x16xf32>
    %25 = arith.addf %22, %24 : vector<16x16xf32>
    %26 = arith.addf %20, %25 : vector<16x16xf32>
    %cst_14 = arith.constant 0.000000e+00 : f32
    %27 = vector.broadcast %cst_14 : f32 to vector<16x16xf32>
    %28 = arith.cmpf oge, %26, %27 : vector<16x16xf32>
    %cst_15 = arith.constant 2.000000e-01 : f32
    %29 = vector.broadcast %cst_15 : f32 to vector<16x16xf32>
    %30 = arith.mulf %29, %26 : vector<16x16xf32>
    %31 = arith.select %28, %26, %30 : vector<16x16xi1>, vector<16x16xf32>
    %cst_16 = arith.constant -1.000000e+30 : f32
    %32 = vector.broadcast %cst_16 : f32 to vector<16x16xf32>
    %33 = arith.select %7, %31, %32 : vector<16x16xi1>, vector<16x16xf32>
    %cst_17 = arith.constant dense<0xFF800000> : vector<16xf32>
    %34 = vector.multi_reduction <maximumf>, %33, %cst_17 [1] : vector<16x16xf32> to vector<16xf32>
    %35 = vector.shape_cast %34 : vector<16xf32> to vector<16x1xf32>
    %36 = vector.broadcast %35 : vector<16x1xf32> to vector<16x16xf32>
    %37 = arith.subf %33, %36 : vector<16x16xf32>
    %38 = math.exp %37 : vector<16x16xf32>
    %cst_18 = arith.constant dense<0.000000e+00> : vector<16xf32>
    %39 = vector.multi_reduction <add>, %38, %cst_18 [1] : vector<16x16xf32> to vector<16xf32>
    %40 = vector.shape_cast %39 : vector<16xf32> to vector<16x1xf32>
    %41 = tpu.reciprocal %40 {approx = true} : vector<16x1xf32> -> vector<16x1xf32>
    %42 = vector.broadcast %41 : vector<16x1xf32> to vector<16x16xf32>
    %43 = arith.mulf %38, %42 : vector<16x16xf32>
    %cst_19 = arith.constant dense<0.000000e+00> : vector<16x32xf32>
    %44 = tpu.matmul %43, %17, %cst_19 {dimension_numbers = #tpu.dot_dimension_numbers<[1], [0], [0], [1], [0, 0, 1, 1], [], []>} : vector<16x16xf32>, vector<16x32xf32>, vector<16x32xf32> -> vector<16x32xf32>
    %45 = arith.select %10, %17, %44 : vector<16x32xi1>, vector<16x32xf32>
    %46 = vector.broadcast %14 : vector<1x32xf32> to vector<16x32xf32>
    %47 = arith.addf %45, %46 : vector<16x32xf32>
    %cst_20 = arith.constant 0.000000e+00 : f32
    %48 = vector.broadcast %cst_20 : f32 to vector<16x32xf32>
    %49 = arith.maximumf %47, %48 : vector<16x32xf32>
    %c32_21 = arith.constant 32 : index
    %c0_22 = arith.constant 0 : index
    %50 = vector.load %arg1[%c32_21, %c0_22] : memref<488x32xf32, #tpu.memory_space<vmem>>, vector<32x32xf32>
    %c160 = arith.constant 160 : index
    %c0_23 = arith.constant 0 : index
    %51 = vector.load %arg1[%c160, %c0_23] : memref<488x32xf32, #tpu.memory_space<vmem>>, vector<32x16xf32>
    %c272 = arith.constant 272 : index
    %c0_24 = arith.constant 0 : index
    %52 = vector.load %arg1[%c272, %c0_24] : memref<488x32xf32, #tpu.memory_space<vmem>>, vector<16x32xf32>
    %c328 = arith.constant 328 : index
    %c0_25 = arith.constant 0 : index
    %53 = vector.load %arg1[%c328, %c0_25] : memref<488x32xf32, #tpu.memory_space<vmem>>, vector<1x32xf32>
    %c4 = arith.constant 4 : index
    %54 = memref.load %arg2[%c4] : memref<16xf32, #tpu.memory_space<smem>>
    %c5 = arith.constant 5 : index
    %55 = memref.load %arg2[%c5] : memref<16xf32, #tpu.memory_space<smem>>
    %cst_26 = arith.constant dense<0.000000e+00> : vector<16x32xf32>
    %56 = tpu.matmul %49, %50, %cst_26 {dimension_numbers = #tpu.dot_dimension_numbers<[1], [0], [0], [1], [0, 0, 1, 1], [], []>} : vector<16x32xf32>, vector<32x32xf32>, vector<16x32xf32> -> vector<16x32xf32>
    %cst_27 = arith.constant dense<0.000000e+00> : vector<16x16xf32>
    %57 = tpu.matmul %56, %51, %cst_27 {dimension_numbers = #tpu.dot_dimension_numbers<[1], [0], [0], [1], [0, 0, 1, 1], [], []>} : vector<16x32xf32>, vector<32x16xf32>, vector<16x16xf32> -> vector<16x16xf32>
    %cst_28 = arith.constant dense<0.000000e+00> : vector<16x16xf32>
    %58 = tpu.matmul %52, %56, %cst_28 {dimension_numbers = #tpu.dot_dimension_numbers<[1], [1], [0], [0], [0, 0, 1, 0], [], []>} : vector<16x32xf32>, vector<16x32xf32>, vector<16x16xf32> -> vector<16x16xf32>
    %59 = arith.addf %57, %58 : vector<16x16xf32>
    %60 = vector.broadcast %54 : f32 to vector<16x16xf32>
    %61 = arith.mulf %60, %2 : vector<16x16xf32>
    %62 = vector.broadcast %55 : f32 to vector<16x16xf32>
    %63 = arith.mulf %62, %3 : vector<16x16xf32>
    %64 = arith.addf %61, %63 : vector<16x16xf32>
    %65 = arith.addf %59, %64 : vector<16x16xf32>
    %cst_29 = arith.constant 0.000000e+00 : f32
    %66 = vector.broadcast %cst_29 : f32 to vector<16x16xf32>
    %67 = arith.cmpf oge, %65, %66 : vector<16x16xf32>
    %cst_30 = arith.constant 2.000000e-01 : f32
    %68 = vector.broadcast %cst_30 : f32 to vector<16x16xf32>
    %69 = arith.mulf %68, %65 : vector<16x16xf32>
    %70 = arith.select %67, %65, %69 : vector<16x16xi1>, vector<16x16xf32>
    %cst_31 = arith.constant -1.000000e+30 : f32
    %71 = vector.broadcast %cst_31 : f32 to vector<16x16xf32>
    %72 = arith.select %7, %70, %71 : vector<16x16xi1>, vector<16x16xf32>
    %cst_32 = arith.constant dense<0xFF800000> : vector<16xf32>
    %73 = vector.multi_reduction <maximumf>, %72, %cst_32 [1] : vector<16x16xf32> to vector<16xf32>
    %74 = vector.shape_cast %73 : vector<16xf32> to vector<16x1xf32>
    %75 = vector.broadcast %74 : vector<16x1xf32> to vector<16x16xf32>
    %76 = arith.subf %72, %75 : vector<16x16xf32>
    %77 = math.exp %76 : vector<16x16xf32>
    %cst_33 = arith.constant dense<0.000000e+00> : vector<16xf32>
    %78 = vector.multi_reduction <add>, %77, %cst_33 [1] : vector<16x16xf32> to vector<16xf32>
    %79 = vector.shape_cast %78 : vector<16xf32> to vector<16x1xf32>
    %80 = tpu.reciprocal %79 {approx = true} : vector<16x1xf32> -> vector<16x1xf32>
    %81 = vector.broadcast %80 : vector<16x1xf32> to vector<16x16xf32>
    %82 = arith.mulf %77, %81 : vector<16x16xf32>
    %cst_34 = arith.constant dense<0.000000e+00> : vector<16x32xf32>
    %83 = tpu.matmul %82, %56, %cst_34 {dimension_numbers = #tpu.dot_dimension_numbers<[1], [0], [0], [1], [0, 0, 1, 1], [], []>} : vector<16x16xf32>, vector<16x32xf32>, vector<16x32xf32> -> vector<16x32xf32>
    %84 = arith.select %10, %56, %83 : vector<16x32xi1>, vector<16x32xf32>
    %85 = vector.broadcast %53 : vector<1x32xf32> to vector<16x32xf32>
    %86 = arith.addf %84, %85 : vector<16x32xf32>
    %cst_35 = arith.constant 0.000000e+00 : f32
    %87 = vector.broadcast %cst_35 : f32 to vector<16x32xf32>
    %88 = arith.maximumf %86, %87 : vector<16x32xf32>
    %c64_36 = arith.constant 64 : index
    %c0_37 = arith.constant 0 : index
    %89 = vector.load %arg1[%c64_36, %c0_37] : memref<488x32xf32, #tpu.memory_space<vmem>>, vector<32x32xf32>
    %c192 = arith.constant 192 : index
    %c0_38 = arith.constant 0 : index
    %90 = vector.load %arg1[%c192, %c0_38] : memref<488x32xf32, #tpu.memory_space<vmem>>, vector<32x16xf32>
    %c288 = arith.constant 288 : index
    %c0_39 = arith.constant 0 : index
    %91 = vector.load %arg1[%c288, %c0_39] : memref<488x32xf32, #tpu.memory_space<vmem>>, vector<16x32xf32>
    %c336 = arith.constant 336 : index
    %c0_40 = arith.constant 0 : index
    %92 = vector.load %arg1[%c336, %c0_40] : memref<488x32xf32, #tpu.memory_space<vmem>>, vector<1x32xf32>
    %c6 = arith.constant 6 : index
    %93 = memref.load %arg2[%c6] : memref<16xf32, #tpu.memory_space<smem>>
    %c7 = arith.constant 7 : index
    %94 = memref.load %arg2[%c7] : memref<16xf32, #tpu.memory_space<smem>>
    %cst_41 = arith.constant dense<0.000000e+00> : vector<16x32xf32>
    %95 = tpu.matmul %88, %89, %cst_41 {dimension_numbers = #tpu.dot_dimension_numbers<[1], [0], [0], [1], [0, 0, 1, 1], [], []>} : vector<16x32xf32>, vector<32x32xf32>, vector<16x32xf32> -> vector<16x32xf32>
    %cst_42 = arith.constant dense<0.000000e+00> : vector<16x16xf32>
    %96 = tpu.matmul %95, %90, %cst_42 {dimension_numbers = #tpu.dot_dimension_numbers<[1], [0], [0], [1], [0, 0, 1, 1], [], []>} : vector<16x32xf32>, vector<32x16xf32>, vector<16x16xf32> -> vector<16x16xf32>
    %cst_43 = arith.constant dense<0.000000e+00> : vector<16x16xf32>
    %97 = tpu.matmul %91, %95, %cst_43 {dimension_numbers = #tpu.dot_dimension_numbers<[1], [1], [0], [0], [0, 0, 1, 0], [], []>} : vector<16x32xf32>, vector<16x32xf32>, vector<16x16xf32> -> vector<16x16xf32>
    %98 = arith.addf %96, %97 : vector<16x16xf32>
    %99 = vector.broadcast %93 : f32 to vector<16x16xf32>
    %100 = arith.mulf %99, %2 : vector<16x16xf32>
    %101 = vector.broadcast %94 : f32 to vector<16x16xf32>
    %102 = arith.mulf %101, %3 : vector<16x16xf32>
    %103 = arith.addf %100, %102 : vector<16x16xf32>
    %104 = arith.addf %98, %103 : vector<16x16xf32>
    %cst_44 = arith.constant 0.000000e+00 : f32
    %105 = vector.broadcast %cst_44 : f32 to vector<16x16xf32>
    %106 = arith.cmpf oge, %104, %105 : vector<16x16xf32>
    %cst_45 = arith.constant 2.000000e-01 : f32
    %107 = vector.broadcast %cst_45 : f32 to vector<16x16xf32>
    %108 = arith.mulf %107, %104 : vector<16x16xf32>
    %109 = arith.select %106, %104, %108 : vector<16x16xi1>, vector<16x16xf32>
    %cst_46 = arith.constant -1.000000e+30 : f32
    %110 = vector.broadcast %cst_46 : f32 to vector<16x16xf32>
    %111 = arith.select %7, %109, %110 : vector<16x16xi1>, vector<16x16xf32>
    %cst_47 = arith.constant dense<0xFF800000> : vector<16xf32>
    %112 = vector.multi_reduction <maximumf>, %111, %cst_47 [1] : vector<16x16xf32> to vector<16xf32>
    %113 = vector.shape_cast %112 : vector<16xf32> to vector<16x1xf32>
    %114 = vector.broadcast %113 : vector<16x1xf32> to vector<16x16xf32>
    %115 = arith.subf %111, %114 : vector<16x16xf32>
    %116 = math.exp %115 : vector<16x16xf32>
    %cst_48 = arith.constant dense<0.000000e+00> : vector<16xf32>
    %117 = vector.multi_reduction <add>, %116, %cst_48 [1] : vector<16x16xf32> to vector<16xf32>
    %118 = vector.shape_cast %117 : vector<16xf32> to vector<16x1xf32>
    %119 = tpu.reciprocal %118 {approx = true} : vector<16x1xf32> -> vector<16x1xf32>
    %120 = vector.broadcast %119 : vector<16x1xf32> to vector<16x16xf32>
    %121 = arith.mulf %116, %120 : vector<16x16xf32>
    %cst_49 = arith.constant dense<0.000000e+00> : vector<16x32xf32>
    %122 = tpu.matmul %121, %95, %cst_49 {dimension_numbers = #tpu.dot_dimension_numbers<[1], [0], [0], [1], [0, 0, 1, 1], [], []>} : vector<16x16xf32>, vector<16x32xf32>, vector<16x32xf32> -> vector<16x32xf32>
    %123 = arith.select %10, %95, %122 : vector<16x32xi1>, vector<16x32xf32>
    %124 = vector.broadcast %92 : vector<1x32xf32> to vector<16x32xf32>
    %125 = arith.addf %123, %124 : vector<16x32xf32>
    %cst_50 = arith.constant 0.000000e+00 : f32
    %126 = vector.broadcast %cst_50 : f32 to vector<16x32xf32>
    %127 = arith.maximumf %125, %126 : vector<16x32xf32>
    %c96 = arith.constant 96 : index
    %c0_51 = arith.constant 0 : index
    %128 = vector.load %arg1[%c96, %c0_51] : memref<488x32xf32, #tpu.memory_space<vmem>>, vector<32x32xf32>
    %c224 = arith.constant 224 : index
    %c0_52 = arith.constant 0 : index
    %129 = vector.load %arg1[%c224, %c0_52] : memref<488x32xf32, #tpu.memory_space<vmem>>, vector<32x16xf32>
    %c304 = arith.constant 304 : index
    %c0_53 = arith.constant 0 : index
    %130 = vector.load %arg1[%c304, %c0_53] : memref<488x32xf32, #tpu.memory_space<vmem>>, vector<16x32xf32>
    %c344 = arith.constant 344 : index
    %c0_54 = arith.constant 0 : index
    %131 = vector.load %arg1[%c344, %c0_54] : memref<488x32xf32, #tpu.memory_space<vmem>>, vector<1x32xf32>
    %c8 = arith.constant 8 : index
    %132 = memref.load %arg2[%c8] : memref<16xf32, #tpu.memory_space<smem>>
    %c9 = arith.constant 9 : index
    %133 = memref.load %arg2[%c9] : memref<16xf32, #tpu.memory_space<smem>>
    %cst_55 = arith.constant dense<0.000000e+00> : vector<16x32xf32>
    %134 = tpu.matmul %127, %128, %cst_55 {dimension_numbers = #tpu.dot_dimension_numbers<[1], [0], [0], [1], [0, 0, 1, 1], [], []>} : vector<16x32xf32>, vector<32x32xf32>, vector<16x32xf32> -> vector<16x32xf32>
    %cst_56 = arith.constant dense<0.000000e+00> : vector<16x16xf32>
    %135 = tpu.matmul %134, %129, %cst_56 {dimension_numbers = #tpu.dot_dimension_numbers<[1], [0], [0], [1], [0, 0, 1, 1], [], []>} : vector<16x32xf32>, vector<32x16xf32>, vector<16x16xf32> -> vector<16x16xf32>
    %cst_57 = arith.constant dense<0.000000e+00> : vector<16x16xf32>
    %136 = tpu.matmul %130, %134, %cst_57 {dimension_numbers = #tpu.dot_dimension_numbers<[1], [1], [0], [0], [0, 0, 1, 0], [], []>} : vector<16x32xf32>, vector<16x32xf32>, vector<16x16xf32> -> vector<16x16xf32>
    %137 = arith.addf %135, %136 : vector<16x16xf32>
    %138 = vector.broadcast %132 : f32 to vector<16x16xf32>
    %139 = arith.mulf %138, %2 : vector<16x16xf32>
    %140 = vector.broadcast %133 : f32 to vector<16x16xf32>
    %141 = arith.mulf %140, %3 : vector<16x16xf32>
    %142 = arith.addf %139, %141 : vector<16x16xf32>
    %143 = arith.addf %137, %142 : vector<16x16xf32>
    %cst_58 = arith.constant 0.000000e+00 : f32
    %144 = vector.broadcast %cst_58 : f32 to vector<16x16xf32>
    %145 = arith.cmpf oge, %143, %144 : vector<16x16xf32>
    %cst_59 = arith.constant 2.000000e-01 : f32
    %146 = vector.broadcast %cst_59 : f32 to vector<16x16xf32>
    %147 = arith.mulf %146, %143 : vector<16x16xf32>
    %148 = arith.select %145, %143, %147 : vector<16x16xi1>, vector<16x16xf32>
    %cst_60 = arith.constant -1.000000e+30 : f32
    %149 = vector.broadcast %cst_60 : f32 to vector<16x16xf32>
    %150 = arith.select %7, %148, %149 : vector<16x16xi1>, vector<16x16xf32>
    %cst_61 = arith.constant dense<0xFF800000> : vector<16xf32>
    %151 = vector.multi_reduction <maximumf>, %150, %cst_61 [1] : vector<16x16xf32> to vector<16xf32>
    %152 = vector.shape_cast %151 : vector<16xf32> to vector<16x1xf32>
    %153 = vector.broadcast %152 : vector<16x1xf32> to vector<16x16xf32>
    %154 = arith.subf %150, %153 : vector<16x16xf32>
    %155 = math.exp %154 : vector<16x16xf32>
    %cst_62 = arith.constant dense<0.000000e+00> : vector<16xf32>
    %156 = vector.multi_reduction <add>, %155, %cst_62 [1] : vector<16x16xf32> to vector<16xf32>
    %157 = vector.shape_cast %156 : vector<16xf32> to vector<16x1xf32>
    %158 = tpu.reciprocal %157 {approx = true} : vector<16x1xf32> -> vector<16x1xf32>
    %159 = vector.broadcast %158 : vector<16x1xf32> to vector<16x16xf32>
    %160 = arith.mulf %155, %159 : vector<16x16xf32>
    %cst_63 = arith.constant dense<0.000000e+00> : vector<16x32xf32>
    %161 = tpu.matmul %160, %134, %cst_63 {dimension_numbers = #tpu.dot_dimension_numbers<[1], [0], [0], [1], [0, 0, 1, 1], [], []>} : vector<16x16xf32>, vector<16x32xf32>, vector<16x32xf32> -> vector<16x32xf32>
    %162 = arith.select %10, %134, %161 : vector<16x32xi1>, vector<16x32xf32>
    %163 = vector.broadcast %131 : vector<1x32xf32> to vector<16x32xf32>
    %164 = arith.addf %162, %163 : vector<16x32xf32>
    %cst_64 = arith.constant 0.000000e+00 : f32
    %165 = vector.broadcast %cst_64 : f32 to vector<16x32xf32>
    %166 = arith.maximumf %164, %165 : vector<16x32xf32>
    %c352 = arith.constant 352 : index
    %c0_65 = arith.constant 0 : index
    %167 = vector.load %arg1[%c352, %c0_65] : memref<488x32xf32, #tpu.memory_space<vmem>>, vector<1x32xf32>
    %cst_66 = arith.constant dense<0.000000e+00> : vector<1x16xf32>
    %168 = tpu.matmul %167, %166, %cst_66 {dimension_numbers = #tpu.dot_dimension_numbers<[1], [1], [0], [0], [0, 0, 1, 0], [], []>} : vector<1x32xf32>, vector<16x32xf32>, vector<1x16xf32> -> vector<1x16xf32>
    %cst_67 = arith.constant dense<0.000000e+00> : vector<16x16xf32>
    %169 = tpu.matmul %4, %5, %cst_67 {dimension_numbers = #tpu.dot_dimension_numbers<[1], [0], [0], [1], [0, 0, 1, 1], [], []>} : vector<16x2xf32>, vector<2x16xf32>, vector<16x16xf32> -> vector<16x16xf32>
    %cst_68 = arith.constant 0.000000e+00 : f32
    %170 = vector.broadcast %cst_68 : f32 to vector<16x16xf32>
    %171 = arith.cmpf ogt, %169, %170 : vector<16x16xf32>
    %172 = vector.shape_cast %168 : vector<1x16xf32> to vector<1x16xf32>
    %173 = vector.broadcast %172 : vector<1x16xf32> to vector<16x16xf32>
    %cst_69 = arith.constant -1.000000e+30 : f32
    %174 = vector.broadcast %cst_69 : f32 to vector<16x16xf32>
    %175 = arith.select %171, %173, %174 : vector<16x16xi1>, vector<16x16xf32>
    %cst_70 = arith.constant dense<0xFF800000> : vector<16xf32>
    %176 = vector.multi_reduction <maximumf>, %175, %cst_70 [1] : vector<16x16xf32> to vector<16xf32>
    %177 = vector.shape_cast %176 : vector<16xf32> to vector<16x1xf32>
    %178 = vector.broadcast %177 : vector<16x1xf32> to vector<16x16xf32>
    %179 = arith.subf %175, %178 : vector<16x16xf32>
    %180 = math.exp %179 : vector<16x16xf32>
    %cst_71 = arith.constant dense<0.000000e+00> : vector<16xf32>
    %181 = vector.multi_reduction <add>, %180, %cst_71 [1] : vector<16x16xf32> to vector<16xf32>
    %182 = vector.shape_cast %181 : vector<16xf32> to vector<16x1xf32>
    %183 = tpu.reciprocal %182 {approx = true} : vector<16x1xf32> -> vector<16x1xf32>
    %184 = vector.broadcast %183 : vector<16x1xf32> to vector<16x16xf32>
    %185 = arith.mulf %180, %184 : vector<16x16xf32>
    %cst_72 = arith.constant dense<0.000000e+00> : vector<16x32xf32>
    %186 = tpu.matmul %185, %166, %cst_72 {dimension_numbers = #tpu.dot_dimension_numbers<[1], [0], [0], [1], [0, 0, 1, 1], [], []>} : vector<16x16xf32>, vector<16x32xf32>, vector<16x32xf32> -> vector<16x32xf32>
    %cst_73 = arith.constant dense<0.000000e+00> : vector<2x32xf32>
    %187 = tpu.matmul %5, %186, %cst_73 {dimension_numbers = #tpu.dot_dimension_numbers<[1], [0], [0], [1], [0, 0, 1, 1], [], []>} : vector<2x16xf32>, vector<16x32xf32>, vector<2x32xf32> -> vector<2x32xf32>
    %cst_74 = arith.constant 1.250000e-01 : f32
    %188 = vector.broadcast %cst_74 : f32 to vector<2x32xf32>
    %189 = arith.mulf %187, %188 : vector<2x32xf32>
    %c360 = arith.constant 360 : index
    %c0_75 = arith.constant 0 : index
    %190 = vector.load %arg1[%c360, %c0_75] : memref<488x32xf32, #tpu.memory_space<vmem>>, vector<32x32xf32>
    %c392 = arith.constant 392 : index
    %c0_76 = arith.constant 0 : index
    %191 = vector.load %arg1[%c392, %c0_76] : memref<488x32xf32, #tpu.memory_space<vmem>>, vector<32x32xf32>
    %c424 = arith.constant 424 : index
    %c0_77 = arith.constant 0 : index
    %192 = vector.load %arg1[%c424, %c0_77] : memref<488x32xf32, #tpu.memory_space<vmem>>, vector<1x32xf32>
    %c432 = arith.constant 432 : index
    %c0_78 = arith.constant 0 : index
    %193 = vector.load %arg1[%c432, %c0_78] : memref<488x32xf32, #tpu.memory_space<vmem>>, vector<1x32xf32>
    %cst_79 = arith.constant dense<0.000000e+00> : vector<16x32xf32>
    %194 = tpu.matmul %166, %190, %cst_79 {dimension_numbers = #tpu.dot_dimension_numbers<[1], [0], [0], [1], [0, 0, 1, 1], [], []>} : vector<16x32xf32>, vector<32x32xf32>, vector<16x32xf32> -> vector<16x32xf32>
    %cst_80 = arith.constant dense<0.000000e+00> : vector<16x32xf32>
    %195 = tpu.matmul %186, %191, %cst_80 {dimension_numbers = #tpu.dot_dimension_numbers<[1], [0], [0], [1], [0, 0, 1, 1], [], []>} : vector<16x32xf32>, vector<32x32xf32>, vector<16x32xf32> -> vector<16x32xf32>
    %196 = arith.addf %194, %195 : vector<16x32xf32>
    %197 = vector.broadcast %192 : vector<1x32xf32> to vector<16x32xf32>
    %198 = arith.addf %196, %197 : vector<16x32xf32>
    %cst_81 = arith.constant 0.000000e+00 : f32
    %199 = vector.broadcast %cst_81 : f32 to vector<16x32xf32>
    %200 = arith.maximumf %198, %199 : vector<16x32xf32>
    %cst_82 = arith.constant dense<0.000000e+00> : vector<1x16xf32>
    %201 = tpu.matmul %193, %200, %cst_82 {dimension_numbers = #tpu.dot_dimension_numbers<[1], [1], [0], [0], [0, 0, 1, 0], [], []>} : vector<1x32xf32>, vector<16x32xf32>, vector<1x16xf32> -> vector<1x16xf32>
    %c0_83 = arith.constant 0 : index
    %202 = memref.load %arg2[%c0_83] : memref<16xf32, #tpu.memory_space<smem>>
    %203 = vector.broadcast %202 : f32 to vector<1x16xf32>
    %204 = arith.addf %201, %203 : vector<1x16xf32>
    %c440 = arith.constant 440 : index
    %c0_84 = arith.constant 0 : index
    %205 = vector.load %arg1[%c440, %c0_84] : memref<488x32xf32, #tpu.memory_space<vmem>>, vector<32x16xf32>
    %c472 = arith.constant 472 : index
    %c0_85 = arith.constant 0 : index
    %206 = vector.load %arg1[%c472, %c0_85] : memref<488x32xf32, #tpu.memory_space<vmem>>, vector<1x16xf32>
    %c480 = arith.constant 480 : index
    %c0_86 = arith.constant 0 : index
    %207 = vector.load %arg1[%c480, %c0_86] : memref<488x32xf32, #tpu.memory_space<vmem>>, vector<1x16xf32>
    %cst_87 = arith.constant dense<0.000000e+00> : vector<2x16xf32>
    %208 = tpu.matmul %189, %205, %cst_87 {dimension_numbers = #tpu.dot_dimension_numbers<[1], [0], [0], [1], [0, 0, 1, 1], [], []>} : vector<2x32xf32>, vector<32x16xf32>, vector<2x16xf32> -> vector<2x16xf32>
    %209 = vector.broadcast %206 : vector<1x16xf32> to vector<2x16xf32>
    %210 = arith.addf %208, %209 : vector<2x16xf32>
    %cst_88 = arith.constant 0.000000e+00 : f32
    %211 = vector.broadcast %cst_88 : f32 to vector<2x16xf32>
    %212 = arith.maximumf %210, %211 : vector<2x16xf32>
    %cst_89 = arith.constant dense<0.000000e+00> : vector<1x2xf32>
    %213 = tpu.matmul %207, %212, %cst_89 {dimension_numbers = #tpu.dot_dimension_numbers<[1], [1], [0], [0], [0, 0, 1, 0], [], []>} : vector<1x16xf32>, vector<2x16xf32>, vector<1x2xf32> -> vector<1x2xf32>
    %c1 = arith.constant 1 : index
    %214 = memref.load %arg2[%c1] : memref<16xf32, #tpu.memory_space<smem>>
    %215 = vector.broadcast %214 : f32 to vector<1x2xf32>
    %216 = arith.addf %213, %215 : vector<1x2xf32>
    %c0_90 = arith.constant 0 : index
    %c0_91 = arith.constant 0 : index
    %217 = vector.load %arg3[%c0_90, %c0_91] : memref<2x128xf32, #tpu.memory_space<vmem>>, vector<1x16xf32>
    tpu.vector_store %arg3[%c0_90, %c0_91], %204 {strides = array<i32>} : memref<2x128xf32, #tpu.memory_space<vmem>>, vector<1x16xf32>,
    %c1_92 = arith.constant 1 : index
    %c0_93 = arith.constant 0 : index
    %218 = vector.load %arg3[%c1_92, %c0_93] : memref<2x128xf32, #tpu.memory_space<vmem>>, vector<1x2xf32>
    tpu.vector_store %arg3[%c1_92, %c0_93], %216 {strides = array<i32>} : memref<2x128xf32, #tpu.memory_space<vmem>>, vector<1x2xf32>,
    return
  }
}

</mosaic_0001>

<llo_original>
// kernel: squeeze.2
$region0: #{squeeze.2}
  %s0 = inlined_call_operand.vmem [shape: f32[16], index: 0, kind: input, shape index: {}]
  %s1 = inlined_call_operand.hbm [shape: f32[2,8], index: 1, kind: output, shape index: {}]
  $region1: #{squeeze.2} parent=0
    #allocation0 [shape = 'u8[1024]{0}', space=vmem, size = 0x400, scoped, tag = 'operand span for operand 1']
    #allocation1 [shape = 's32[1]{0}', space=sflag, size = 0x4, scoped, tag = 'scoped memory for squeeze.2']
    #allocation2 [shape = 'u8[4096]{0}', space=vmem, size = 0x1000, scoped, tag = 'scoped mem for output reshape']
    #allocation3 [shape = 'u8[4096]{0}', space=vmem, size = 0x1000, scoped, tag = 'scoped mem for input reshape']
    %2 = vsyncpa [#allocation1], 0
    %s4 = ssub.s32 2, 1
    %v5 = vld [vmem:[%s0] sm:%s4]
    %6 = vst [vmem:[#allocation3] sm:%s4] %v5
    %v7 = vld [vmem:[#allocation3] sm:$0x1]
    %vm8 = vcmask 64512
    %9 = vst.msk [vmem:[#allocation2] sm:$0x1] %vm8, %v7
    %v10 = vld [vmem:[#allocation3] sm:$0x1]
    %11 = vrot.lane.b32.xlu0 %v10, 120
    %v12 = vpop.permute.xlu0 %11
    %vm13 = vcmask 64512
    %s14 = scalar_lea.vmem [#allocation2], 1
    %15 = vst.msk [vmem:[%s14] sm:$0x1] %vm13, %v12
    %s17 = ssub.s32 4, 1
    %v18 = vld [vmem:[#allocation2] sm:%s17]
    %s20 = ssub.s32 4, 1
    %21 = vst [vmem:[#allocation0] sm:%s20] %v18
    %23 = vsyncadd [#allocation1], 0
    %s25 = sshll.u32 [#allocation0], 4
    %s26 = int_to_ptr.vmem [resolvable:$true] %s25
    %s27 = sshll.u32 %s1, 4
    %s28 = int_to_ptr.hbm [resolvable:$true] %s27
    %30 = dma.vmem_to_hbm [thread:$0]  %s26, 32, %s28, [#allocation1]
    %32 = dma.done [#allocation1], 32
    %33 = vsyncpa [#allocation1], 1

// kernel: hybrid_network_global.1
$region0: #{hybrid_network_global.1}
  #allocation0 [shape = 'u32[]', space=smem, size = 0x4, offset = 0x4, fixed_abs, tag = 'smem constant byte address 0x4 - core index']
  #allocation1 [shape = 'u32[72,128]{1,0:T(1,128)}', space=vmem, size = 0x9000, scoped, tag = 'internal scratch']
  %s0 = inlined_call_operand.vmem [shape: f32[88,32], index: 0, kind: input, shape index: {}]
  %s1 = inlined_call_operand.vmem [shape: f32[488,32], index: 1, kind: input, shape index: {}]
  %s2 = inlined_call_operand.vmem [shape: f32[16], index: 2, kind: input, shape index: {}]
  %s3 = inlined_call_operand.vmem [shape: f32[2,128], index: 3, kind: output, shape index: {}]
  %s4 = sld [smem:[#allocation0]]
  $region26: #{hybrid_network_global.1} parent=0
    _
  %s6 = ssub.s32 1, %s4
  %s7 = scalar_select 0, %s6, %s4
  $region1: #{hybrid_network_global.1} parent=0
    #allocation2 [shape = 'u8[512]{0}', space=smem, size = 0x200, scoped, tag = 'input window, operand 2, single buffered']
    #allocation3 [shape = 's32[1]{0}', space=sflag, size = 0x4, scoped, tag = 'scoped memory for hybrid_network_global.1']
    %8 = vsyncpa [#allocation3], 0
    // Predicated region
    $region2: #{hybrid_network_global.1} parent=1 // pred_check
      _
    $region3: #{hybrid_network_global.1} parent=1 // pred_check_branch
      %10 = sbr.rel (0) target = $region5
    $region4: #{hybrid_network_global.1} parent=1 // pred_region
      _
    $region5: #{hybrid_network_global.1} parent=1 // pred_fallthru
      _
    // Predicated region
    $region6: #{hybrid_network_global.1} parent=1 // pred_check
      _
    $region7: #{hybrid_network_global.1} parent=1 // pred_check_branch
      %12 = sbr.rel (0) target = $region9
    $region8: #{hybrid_network_global.1} parent=1 // pred_region
      _
    $region9: #{hybrid_network_global.1} parent=1 // pred_fallthru
      _
    // Predicated region
    $region10: #{hybrid_network_global.1} parent=1 // pred_check
      _
    $region11: #{hybrid_network_global.1} parent=1 // pred_check_branch
      %14 = sbr.rel (0) target = $region13
    $region12: #{hybrid_network_global.1} parent=1 // pred_region
      %16 = vsyncadd [#allocation3], 0
      %s18 = sshll.u32 %s2, 4
      %s19 = int_to_ptr.vmem [resolvable:$true] %s18
      %21 = dma.vmem_to_smem %s19, 16, [#allocation2], [#allocation3]
    $region13: #{hybrid_network_global.1} parent=1 // pred_fallthru
      _
    // Predicated region
    $region14: #{hybrid_network_global.1} parent=1 // pred_check
      _
    $region15: #{hybrid_network_global.1} parent=1 // pred_check_branch
      %23 = sbr.rel (0) target = $region17
    $region16: #{hybrid_network_global.1} parent=1 // pred_region
      %25 = dma.done [#allocation3], 16
    $region17: #{hybrid_network_global.1} parent=1 // pred_fallthru
      _
    %26 = sfence
    %v27 = vld [vmem:[%s0] sm:$0xff]
    %v28 = vld [vmem:[%s0 + $0x8] sm:$0xff]
    %v29 = vld [vmem:[%s0 + $0x10] sm:$0xff]
    %v30 = vld [vmem:[%s0 + $0x18] sm:$0xff]
    %v31 = vld [vmem:[%s0 + $0x20] sm:$0xff]
    %v32 = vld [vmem:[%s0 + $0x28] sm:$0xff]
    %v33 = vld [vmem:[%s0 + $0x30] sm:$0xff]
    %v34 = vld [vmem:[%s0 + $0x38] sm:$0xff]
    %v35 = vld [vmem:[%s0 + $0x40] sm:$0xff]
    %v36 = vld [vmem:[%s0 + $0x48] sm:$0xff]
    %v37 = vld [vmem:[%s0 + $0x50] sm:$0x3]
    %vm38 = vcmp.gt.f32.partialorder %v29, 0.0
    %vm39 = vcmp.gt.f32.partialorder %v30, 0.0
    %v40 = vlaneseq
    %v41 = vand.u32 %v40, 127
    %vm42 = vcmp.lt.s32.totalorder %v41, 16
    %v43 = vld [vmem:[%s1] sm:$0xff]
    %v44 = vld [vmem:[%s1 + $0x8] sm:$0xff]
    %v45 = vld [vmem:[%s1 + $0x10] sm:$0xff]
    %v46 = vld [vmem:[%s1 + $0x18] sm:$0xff]
    %v47 = vld [vmem:[%s1 + $0x80] sm:$0xff]
    %v48 = vld [vmem:[%s1 + $0x88] sm:$0xff]
    %v49 = vld [vmem:[%s1 + $0x90] sm:$0xff]
    %v50 = vld [vmem:[%s1 + $0x98] sm:$0xff]
    %v51 = vld [vmem:[%s1 + $0x100] sm:$0xff]
    %v52 = vld [vmem:[%s1 + $0x108] sm:$0xff]
    %v53 = vld [vmem:[%s1 + $0x140] sm:$0x1]
    %s54 = sld [smem:[#allocation2 + $0x2]]
    %s55 = sld [smem:[#allocation2 + $0x3]]
    %vm56 = vcmask 261120
    %v58 = vsel %vm56, %v27, 0
    %v61 = vsel %vm56, %v28, 0
    %63 = vmatpush.msra.mxu0 0.0
    %64 = vmatpush.msra.mxu0 0.0
    %65 = vmatpush.msra.mxu0 0.0
    %66 = vmatpush.msra.mxu0 0.0
    %67 = vmatpush.msra.mxu0 0.0
    %68 = vmatpush.msra.mxu0 0.0
    %69 = vmatpush.msra.mxu0 0.0
    %70 = vmatpush.msra.mxu0 0.0
    %71 = vmatpush.msra.mxu0 0.0
    %72 = vmatpush.msra.mxu0 0.0
    %73 = vmatpush.msra.mxu0 0.0
    %74 = vmatpush.msra.mxu0 0.0
    %75 = vmatpush.msra.mxu0 %v46
    %76 = vmatpush.msra.mxu0 %v45
    %77 = vmatpush.msra.mxu0 %v44
    %78 = vmatpush.msra.mxu0 %v43
    %79 = vmatmul.f32.gmra.mxu0 %v58
    %v80 = vpop.f32.mrf.mxu0
    %v81 = vadd.f32 0.0, %v80
    %82 = vmatmul.f32.gmra.mxu0 %v61
    %v83 = vpop.f32.mrf.mxu0
    %v84 = vadd.f32 0.0, %v83
    %85 = vdwg.mxu0
    %v87 = vsel %vm56, %v51, 0
    %v90 = vsel %vm56, %v52, 0
    %v93 = vsel %vm56, %v81, 0
    %v96 = vsel %vm56, %v84, 0
    %98 = vmatpush.xpose.msra.mxu0 0.0
    %99 = vmatpush.xpose.msra.mxu0 0.0
    %100 = vmatpush.xpose.msra.mxu0 0.0
    %101 = vmatpush.xpose.msra.mxu0 0.0
    %102 = vmatpush.xpose.msra.mxu0 0.0
    %103 = vmatpush.xpose.msra.mxu0 0.0
    %104 = vmatpush.xpose.msra.mxu0 0.0
    %105 = vmatpush.xpose.msra.mxu0 0.0
    %106 = vmatpush.xpose.msra.mxu0 0.0
    %107 = vmatpush.xpose.msra.mxu0 0.0
    %108 = vmatpush.xpose.msra.mxu0 0.0
    %109 = vmatpush.xpose.msra.mxu0 0.0
    %110 = vmatpush.xpose.msra.mxu0 0.0
    %111 = vmatpush.xpose.msra.mxu0 0.0
    %112 = vmatpush.xpose.msra.mxu0 %v96
    %113 = vmatpush.xpose.msra.mxu0 %v93
    %114 = vmatmul.f32.gmra.mxu0 %v87
    %v115 = vpop.f32.mrf.mxu0
    %v116 = vadd.f32 0.0, %v115
    %117 = vmatmul.f32.gmra.mxu0 %v90
    %v118 = vpop.f32.mrf.mxu0
    %v119 = vadd.f32 0.0, %v118
    %120 = vdwg.mxu0
    %121 = vmatpush.msra.mxu0 0.0
    %122 = vmatpush.msra.mxu0 0.0
    %123 = vmatpush.msra.mxu0 0.0
    %124 = vmatpush.msra.mxu0 0.0
    %125 = vmatpush.msra.mxu0 0.0
    %126 = vmatpush.msra.mxu0 0.0
    %127 = vmatpush.msra.mxu0 0.0
    %128 = vmatpush.msra.mxu0 0.0
    %129 = vmatpush.msra.mxu0 0.0
    %130 = vmatpush.msra.mxu0 0.0
    %131 = vmatpush.msra.mxu0 0.0
    %132 = vmatpush.msra.mxu0 0.0
    %133 = vmatpush.msra.mxu0 %v50
    %134 = vmatpush.msra.mxu0 %v49
    %135 = vmatpush.msra.mxu0 %v48
    %136 = vmatpush.msra.mxu0 %v47
    %137 = vmatmul.f32.gmra.mxu0 %v93
    %v138 = vpop.f32.mrf.mxu0
    %v139 = vadd.f32 %v116, %v138
    %140 = vmatmul.f32.gmra.mxu0 %v96
    %v141 = vpop.f32.mrf.mxu0
    %v142 = vadd.f32 %v119, %v141
    %143 = vdwg.mxu0
    %v144 = vstv %s54
    %v145 = vmul.f32 %v144, %v31
    %v146 = vmul.f32 %v144, %v32
    %v147 = vstv %s55
    %v148 = vmul.f32 %v147, %v33
    %v149 = vmul.f32 %v147, %v34
    %v150 = vadd.f32 %v145, %v148
    %v151 = vadd.f32 %v146, %v149
    %v152 = vadd.f32 %v139, %v150
    %v153 = vadd.f32 %v142, %v151
    %vm154 = vcmp.ge.f32.partialorder %v152, 0.0
    %vm155 = vcmp.ge.f32.partialorder %v153, 0.0
    %v156 = vmul.f32 %v152, 0.2
    %v157 = vmul.f32 %v153, 0.2
    %v158 = vsel %vm154, %v152, %v156
    %v159 = vsel %vm155, %v153, %v157
    %v160 = vsel %vm38, %v158, -1e+30
    %v161 = vsel %vm39, %v159, -1e+30
    %vm162 = vcmask 130048
    %v163 = vsel %vm162, %v160, -inf
    %164 = vmax.xlane.f32.xlu0 %v163
    %v165 = vpop.xlane.xlu0 %164
    %v166 = vsel %vm162, %v161, -inf
    %167 = vmax.xlane.f32.xlu0 %v166
    %v168 = vpop.xlane.xlu0 %167
    %v169 = vsub.f32 %v160, %v165
    %v170 = vsub.f32 %v161, %v168
    %v171 = vmul.f32 %v169, 1.442695
    %v172 = vpow.pop %v171
    %v173 = vmul.f32 %v170, 1.442695
    %v174 = vpow.pop %v173
    %v175 = vsel %vm162, %v172, 0.0
    %176 = vadd.xlane.f32.xlu0 %v175
    %v177 = vpop.xlane.xlu0 %176
    %v178 = vsel %vm162, %v174, 0.0
    %179 = vadd.xlane.f32.xlu0 %v178
    %v180 = vpop.xlane.xlu0 %179
    %v181 = vrcp.pop %v177
    %v182 = vrcp.pop %v180
    %v183 = vmul.f32 %v172, %v181
    %v184 = vmul.f32 %v174, %v182
    %v186 = vsel %vm162, %v183, 0
    %v189 = vsel %vm162, %v184, 0
    %191 = vmatpush.msra.mxu0 0.0
    %192 = vmatpush.msra.mxu0 0.0
    %193 = vmatpush.msra.mxu0 0.0
    %194 = vmatpush.msra.mxu0 0.0
    %195 = vmatpush.msra.mxu0 0.0
    %196 = vmatpush.msra.mxu0 0.0
    %197 = vmatpush.msra.mxu0 0.0
    %198 = vmatpush.msra.mxu0 0.0
    %199 = vmatpush.msra.mxu0 0.0
    %200 = vmatpush.msra.mxu0 0.0
    %201 = vmatpush.msra.mxu0 0.0
    %202 = vmatpush.msra.mxu0 0.0
    %203 = vmatpush.msra.mxu0 0.0
    %204 = vmatpush.msra.mxu0 0.0
    %205 = vmatpush.msra.mxu0 %v84
    %206 = vmatpush.msra.mxu0 %v81
    %207 = vmatmul.f32.gmra.mxu0 %v186
    %v208 = vpop.f32.mrf.mxu0
    %v209 = vadd.f32 0.0, %v208
    %210 = vmatmul.f32.gmra.mxu0 %v189
    %v211 = vpop.f32.mrf.mxu0
    %v212 = vadd.f32 0.0, %v211
    %213 = vdwg.mxu0
    %v214 = vsel %vm42, %v81, %v209
    %v215 = vsel %vm42, %v84, %v212
    %v216 = vperm.slane %v53, 0
    %v217 = vadd.f32 %v214, %v216
    %v218 = vadd.f32 %v215, %v216
    %v219 = vmax.f32 %v217, 0.0
    %v220 = vmax.f32 %v218, 0.0
    %v221 = vld [vmem:[%s1 + $0x20] sm:$0xff]
    %v222 = vld [vmem:[%s1 + $0x28] sm:$0xff]
    %v223 = vld [vmem:[%s1 + $0x30] sm:$0xff]
    %v224 = vld [vmem:[%s1 + $0x38] sm:$0xff]
    %v225 = vld [vmem:[%s1 + $0xa0] sm:$0xff]
    %v226 = vld [vmem:[%s1 + $0xa8] sm:$0xff]
    %v227 = vld [vmem:[%s1 + $0xb0] sm:$0xff]
    %v228 = vld [vmem:[%s1 + $0xb8] sm:$0xff]
    %v229 = vld [vmem:[%s1 + $0x110] sm:$0xff]
    %v230 = vld [vmem:[%s1 + $0x118] sm:$0xff]
    %v231 = vld [vmem:[%s1 + $0x148] sm:$0x1]
    %s232 = sld [smem:[#allocation2 + $0x4]]
    %s233 = sld [smem:[#allocation2 + $0x5]]
    %v235 = vsel %vm56, %v219, 0
    %v238 = vsel %vm56, %v220, 0
    %240 = vmatpush.msra.mxu0 0.0
    %241 = vmatpush.msra.mxu0 0.0
    %242 = vmatpush.msra.mxu0 0.0
    %243 = vmatpush.msra.mxu0 0.0
    %244 = vmatpush.msra.mxu0 0.0
    %245 = vmatpush.msra.mxu0 0.0
    %246 = vmatpush.msra.mxu0 0.0
    %247 = vmatpush.msra.mxu0 0.0
    %248 = vmatpush.msra.mxu0 0.0
    %249 = vmatpush.msra.mxu0 0.0
    %250 = vmatpush.msra.mxu0 0.0
    %251 = vmatpush.msra.mxu0 0.0
    %252 = vmatpush.msra.mxu0 %v224
    %253 = vmatpush.msra.mxu0 %v223
    %254 = vmatpush.msra.mxu0 %v222
    %255 = vmatpush.msra.mxu0 %v221
    %256 = vmatmul.f32.gmra.mxu0 %v235
    %v257 = vpop.f32.mrf.mxu0
    %v258 = vadd.f32 0.0, %v257
    %259 = vmatmul.f32.gmra.mxu0 %v238
    %v260 = vpop.f32.mrf.mxu0
    %v261 = vadd.f32 0.0, %v260
    %262 = vdwg.mxu0
    %v264 = vsel %vm56, %v229, 0
    %v267 = vsel %vm56, %v230, 0
    %v270 = vsel %vm56, %v258, 0
    %v273 = vsel %vm56, %v261, 0
    %275 = vmatpush.xpose.msra.mxu0 0.0
    %276 = vmatpush.xpose.msra.mxu0 0.0
    %277 = vmatpush.xpose.msra.mxu0 0.0
    %278 = vmatpush.xpose.msra.mxu0 0.0
    %279 = vmatpush.xpose.msra.mxu0 0.0
    %280 = vmatpush.xpose.msra.mxu0 0.0
    %281 = vmatpush.xpose.msra.mxu0 0.0
    %282 = vmatpush.xpose.msra.mxu0 0.0
    %283 = vmatpush.xpose.msra.mxu0 0.0
    %284 = vmatpush.xpose.msra.mxu0 0.0
    %285 = vmatpush.xpose.msra.mxu0 0.0
    %286 = vmatpush.xpose.msra.mxu0 0.0
    %287 = vmatpush.xpose.msra.mxu0 0.0
    %288 = vmatpush.xpose.msra.mxu0 0.0
    %289 = vmatpush.xpose.msra.mxu0 %v273
    %290 = vmatpush.xpose.msra.mxu0 %v270
    %291 = vmatmul.f32.gmra.mxu0 %v264
    %v292 = vpop.f32.mrf.mxu0
    %v293 = vadd.f32 0.0, %v292
    %294 = vmatmul.f32.gmra.mxu0 %v267
    %v295 = vpop.f32.mrf.mxu0
    %v296 = vadd.f32 0.0, %v295
    %297 = vdwg.mxu0
    %298 = vmatpush.msra.mxu0 0.0
    %299 = vmatpush.msra.mxu0 0.0
    %300 = vmatpush.msra.mxu0 0.0
    %301 = vmatpush.msra.mxu0 0.0
    %302 = vmatpush.msra.mxu0 0.0
    %303 = vmatpush.msra.mxu0 0.0
    %304 = vmatpush.msra.mxu0 0.0
    %305 = vmatpush.msra.mxu0 0.0
    %306 = vmatpush.msra.mxu0 0.0
    %307 = vmatpush.msra.mxu0 0.0
    %308 = vmatpush.msra.mxu0 0.0
    %309 = vmatpush.msra.mxu0 0.0
    %310 = vmatpush.msra.mxu0 %v228
    %311 = vmatpush.msra.mxu0 %v227
    %312 = vmatpush.msra.mxu0 %v226
    %313 = vmatpush.msra.mxu0 %v225
    %314 = vmatmul.f32.gmra.mxu0 %v270
    %v315 = vpop.f32.mrf.mxu0
    %v316 = vadd.f32 %v293, %v315
    %317 = vmatmul.f32.gmra.mxu0 %v273
    %v318 = vpop.f32.mrf.mxu0
    %v319 = vadd.f32 %v296, %v318
    %320 = vdwg.mxu0
    %v321 = vstv %s232
    %v322 = vmul.f32 %v321, %v31
    %v323 = vmul.f32 %v321, %v32
    %v324 = vstv %s233
    %v325 = vmul.f32 %v324, %v33
    %v326 = vmul.f32 %v324, %v34
    %v327 = vadd.f32 %v322, %v325
    %v328 = vadd.f32 %v323, %v326
    %v329 = vadd.f32 %v316, %v327
    %v330 = vadd.f32 %v319, %v328
    %vm331 = vcmp.ge.f32.partialorder %v329, 0.0
    %vm332 = vcmp.ge.f32.partialorder %v330, 0.0
    %v333 = vmul.f32 %v329, 0.2
    %v334 = vmul.f32 %v330, 0.2
    %v335 = vsel %vm331, %v329, %v333
    %v336 = vsel %vm332, %v330, %v334
    %v337 = vsel %vm38, %v335, -1e+30
    %v338 = vsel %vm39, %v336, -1e+30
    %v339 = vsel %vm162, %v337, -inf
    %340 = vmax.xlane.f32.xlu0 %v339
    %v341 = vpop.xlane.xlu0 %340
    %v342 = vsel %vm162, %v338, -inf
    %343 = vmax.xlane.f32.xlu0 %v342
    %v344 = vpop.xlane.xlu0 %343
    %v345 = vsub.f32 %v337, %v341
    %v346 = vsub.f32 %v338, %v344
    %v347 = vmul.f32 %v345, 1.442695
    %v348 = vpow.pop %v347
    %v349 = vmul.f32 %v346, 1.442695
    %v350 = vpow.pop %v349
    %v351 = vsel %vm162, %v348, 0.0
    %352 = vadd.xlane.f32.xlu0 %v351
    %v353 = vpop.xlane.xlu0 %352
    %v354 = vsel %vm162, %v350, 0.0
    %355 = vadd.xlane.f32.xlu0 %v354
    %v356 = vpop.xlane.xlu0 %355
    %v357 = vrcp.pop %v353
    %v358 = vrcp.pop %v356
    %v359 = vmul.f32 %v348, %v357
    %v360 = vmul.f32 %v350, %v358
    %v362 = vsel %vm162, %v359, 0
    %v365 = vsel %vm162, %v360, 0
    %367 = vmatpush.msra.mxu0 0.0
    %368 = vmatpush.msra.mxu0 0.0
    %369 = vmatpush.msra.mxu0 0.0
    %370 = vmatpush.msra.mxu0 0.0
    %371 = vmatpush.msra.mxu0 0.0
    %372 = vmatpush.msra.mxu0 0.0
    %373 = vmatpush.msra.mxu0 0.0
    %374 = vmatpush.msra.mxu0 0.0
    %375 = vmatpush.msra.mxu0 0.0
    %376 = vmatpush.msra.mxu0 0.0
    %377 = vmatpush.msra.mxu0 0.0
    %378 = vmatpush.msra.mxu0 0.0
    %379 = vmatpush.msra.mxu0 0.0
    %380 = vmatpush.msra.mxu0 0.0
    %381 = vmatpush.msra.mxu0 %v261
    %382 = vmatpush.msra.mxu0 %v258
    %383 = vmatmul.f32.gmra.mxu0 %v362
    %v384 = vpop.f32.mrf.mxu0
    %v385 = vadd.f32 0.0, %v384
    %386 = vmatmul.f32.gmra.mxu0 %v365
    %v387 = vpop.f32.mrf.mxu0
    %v388 = vadd.f32 0.0, %v387
    %389 = vdwg.mxu0
    %v390 = vsel %vm42, %v258, %v385
    %v391 = vsel %vm42, %v261, %v388
    %v392 = vperm.slane %v231, 0
    %v393 = vadd.f32 %v390, %v392
    %v394 = vadd.f32 %v391, %v392
    %v395 = vmax.f32 %v393, 0.0
    %v396 = vmax.f32 %v394, 0.0
    %v397 = vld [vmem:[%s1 + $0x40] sm:$0xff]
    %v398 = vld [vmem:[%s1 + $0x48] sm:$0xff]
    %v399 = vld [vmem:[%s1 + $0x50] sm:$0xff]
    %v400 = vld [vmem:[%s1 + $0x58] sm:$0xff]
    %v401 = vld [vmem:[%s1 + $0xc0] sm:$0xff]
    %v402 = vld [vmem:[%s1 + $0xc8] sm:$0xff]
    %v403 = vld [vmem:[%s1 + $0xd0] sm:$0xff]
    %v404 = vld [vmem:[%s1 + $0xd8] sm:$0xff]
    %v405 = vld [vmem:[%s1 + $0x120] sm:$0xff]
    %v406 = vld [vmem:[%s1 + $0x128] sm:$0xff]
    %v407 = vld [vmem:[%s1 + $0x150] sm:$0x1]
    %s408 = sld [smem:[#allocation2 + $0x6]]
    %s409 = sld [smem:[#allocation2 + $0x7]]
    %v411 = vsel %vm56, %v395, 0
    %v414 = vsel %vm56, %v396, 0
    %416 = vmatpush.msra.mxu0 0.0
    %417 = vmatpush.msra.mxu0 0.0
    %418 = vmatpush.msra.mxu0 0.0
    %419 = vmatpush.msra.mxu0 0.0
    %420 = vmatpush.msra.mxu0 0.0
    %421 = vmatpush.msra.mxu0 0.0
    %422 = vmatpush.msra.mxu0 0.0
    %423 = vmatpush.msra.mxu0 0.0
    %424 = vmatpush.msra.mxu0 0.0
    %425 = vmatpush.msra.mxu0 0.0
    %426 = vmatpush.msra.mxu0 0.0
    %427 = vmatpush.msra.mxu0 0.0
    %428 = vmatpush.msra.mxu0 %v400
    %429 = vmatpush.msra.mxu0 %v399
    %430 = vmatpush.msra.mxu0 %v398
    %431 = vmatpush.msra.mxu0 %v397
    %432 = vmatmul.f32.gmra.mxu0 %v411
    %v433 = vpop.f32.mrf.mxu0
    %v434 = vadd.f32 0.0, %v433
    %435 = vmatmul.f32.gmra.mxu0 %v414
    %v436 = vpop.f32.mrf.mxu0
    %v437 = vadd.f32 0.0, %v436
    %438 = vdwg.mxu0
    %v440 = vsel %vm56, %v405, 0
    %v443 = vsel %vm56, %v406, 0
    %v446 = vsel %vm56, %v434, 0
    %v449 = vsel %vm56, %v437, 0
    %451 = vmatpush.xpose.msra.mxu0 0.0
    %452 = vmatpush.xpose.msra.mxu0 0.0
    %453 = vmatpush.xpose.msra.mxu0 0.0
    %454 = vmatpush.xpose.msra.mxu0 0.0
    %455 = vmatpush.xpose.msra.mxu0 0.0
    %456 = vmatpush.xpose.msra.mxu0 0.0
    %457 = vmatpush.xpose.msra.mxu0 0.0
    %458 = vmatpush.xpose.msra.mxu0 0.0
    %459 = vmatpush.xpose.msra.mxu0 0.0
    %460 = vmatpush.xpose.msra.mxu0 0.0
    %461 = vmatpush.xpose.msra.mxu0 0.0
    %462 = vmatpush.xpose.msra.mxu0 0.0
    %463 = vmatpush.xpose.msra.mxu0 0.0
    %464 = vmatpush.xpose.msra.mxu0 0.0
    %465 = vmatpush.xpose.msra.mxu0 %v449
    %466 = vmatpush.xpose.msra.mxu0 %v446
    %467 = vmatmul.f32.gmra.mxu0 %v440
    %v468 = vpop.f32.mrf.mxu0
    %v469 = vadd.f32 0.0, %v468
    %470 = vmatmul.f32.gmra.mxu0 %v443
    %v471 = vpop.f32.mrf.mxu0
    %v472 = vadd.f32 0.0, %v471
    %473 = vdwg.mxu0
    %474 = vmatpush.msra.mxu0 0.0
    %475 = vmatpush.msra.mxu0 0.0
    %476 = vmatpush.msra.mxu0 0.0
    %477 = vmatpush.msra.mxu0 0.0
    %478 = vmatpush.msra.mxu0 0.0
    %479 = vmatpush.msra.mxu0 0.0
    %480 = vmatpush.msra.mxu0 0.0
    %481 = vmatpush.msra.mxu0 0.0
    %482 = vmatpush.msra.mxu0 0.0
    %483 = vmatpush.msra.mxu0 0.0
    %484 = vmatpush.msra.mxu0 0.0
    %485 = vmatpush.msra.mxu0 0.0
    %486 = vmatpush.msra.mxu0 %v404
    %487 = vmatpush.msra.mxu0 %v403
    %488 = vmatpush.msra.mxu0 %v402
    %489 = vmatpush.msra.mxu0 %v401
    %490 = vmatmul.f32.gmra.mxu0 %v446
    %v491 = vpop.f32.mrf.mxu0
    %v492 = vadd.f32 %v469, %v491
    %493 = vmatmul.f32.gmra.mxu0 %v449
    %v494 = vpop.f32.mrf.mxu0
    %v495 = vadd.f32 %v472, %v494
    %496 = vdwg.mxu0
    %v497 = vstv %s408
    %v498 = vmul.f32 %v497, %v31
    %v499 = vmul.f32 %v497, %v32
    %v500 = vstv %s409
    %v501 = vmul.f32 %v500, %v33
    %v502 = vmul.f32 %v500, %v34
    %v503 = vadd.f32 %v498, %v501
    %v504 = vadd.f32 %v499, %v502
    %v505 = vadd.f32 %v492, %v503
    %v506 = vadd.f32 %v495, %v504
    %vm507 = vcmp.ge.f32.partialorder %v505, 0.0
    %vm508 = vcmp.ge.f32.partialorder %v506, 0.0
    %v509 = vmul.f32 %v505, 0.2
    %v510 = vmul.f32 %v506, 0.2
    %v511 = vsel %vm507, %v505, %v509
    %v512 = vsel %vm508, %v506, %v510
    %v513 = vsel %vm38, %v511, -1e+30
    %v514 = vsel %vm39, %v512, -1e+30
    %v515 = vsel %vm162, %v513, -inf
    %516 = vmax.xlane.f32.xlu0 %v515
    %v517 = vpop.xlane.xlu0 %516
    %v518 = vsel %vm162, %v514, -inf
    %519 = vmax.xlane.f32.xlu0 %v518
    %v520 = vpop.xlane.xlu0 %519
    %v521 = vsub.f32 %v513, %v517
    %v522 = vsub.f32 %v514, %v520
    %v523 = vmul.f32 %v521, 1.442695
    %v524 = vpow.pop %v523
    %v525 = vmul.f32 %v522, 1.442695
    %v526 = vpow.pop %v525
    %v527 = vsel %vm162, %v524, 0.0
    %528 = vadd.xlane.f32.xlu0 %v527
    %v529 = vpop.xlane.xlu0 %528
    %v530 = vsel %vm162, %v526, 0.0
    %531 = vadd.xlane.f32.xlu0 %v530
    %v532 = vpop.xlane.xlu0 %531
    %v533 = vrcp.pop %v529
    %v534 = vrcp.pop %v532
    %v535 = vmul.f32 %v524, %v533
    %v536 = vmul.f32 %v526, %v534
    %v538 = vsel %vm162, %v535, 0
    %v541 = vsel %vm162, %v536, 0
    %543 = vmatpush.msra.mxu0 0.0
    %544 = vmatpush.msra.mxu0 0.0
    %545 = vmatpush.msra.mxu0 0.0
    %546 = vmatpush.msra.mxu0 0.0
    %547 = vmatpush.msra.mxu0 0.0
    %548 = vmatpush.msra.mxu0 0.0
    %549 = vmatpush.msra.mxu0 0.0
    %550 = vmatpush.msra.mxu0 0.0
    %551 = vmatpush.msra.mxu0 0.0
    %552 = vmatpush.msra.mxu0 0.0
    %553 = vmatpush.msra.mxu0 0.0
    %554 = vmatpush.msra.mxu0 0.0
    %555 = vmatpush.msra.mxu0 0.0
    %556 = vmatpush.msra.mxu0 0.0
    %557 = vmatpush.msra.mxu0 %v437
    %558 = vmatpush.msra.mxu0 %v434
    %559 = vmatmul.f32.gmra.mxu0 %v538
    %v560 = vpop.f32.mrf.mxu0
    %v561 = vadd.f32 0.0, %v560
    %562 = vmatmul.f32.gmra.mxu0 %v541
    %v563 = vpop.f32.mrf.mxu0
    %v564 = vadd.f32 0.0, %v563
    %565 = vdwg.mxu0
    %v566 = vsel %vm42, %v434, %v561
    %v567 = vsel %vm42, %v437, %v564
    %v568 = vperm.slane %v407, 0
    %v569 = vadd.f32 %v566, %v568
    %v570 = vadd.f32 %v567, %v568
    %v571 = vmax.f32 %v569, 0.0
    %v572 = vmax.f32 %v570, 0.0
    %v573 = vld [vmem:[%s1 + $0x60] sm:$0xff]
    %v574 = vld [vmem:[%s1 + $0x68] sm:$0xff]
    %v575 = vld [vmem:[%s1 + $0x70] sm:$0xff]
    %v576 = vld [vmem:[%s1 + $0x78] sm:$0xff]
    %v577 = vld [vmem:[%s1 + $0xe0] sm:$0xff]
    %v578 = vld [vmem:[%s1 + $0xe8] sm:$0xff]
    %v579 = vld [vmem:[%s1 + $0xf0] sm:$0xff]
    %v580 = vld [vmem:[%s1 + $0xf8] sm:$0xff]
    %v581 = vld [vmem:[%s1 + $0x130] sm:$0xff]
    %v582 = vld [vmem:[%s1 + $0x138] sm:$0xff]
    %v583 = vld [vmem:[%s1 + $0x158] sm:$0x1]
    %s584 = sld [smem:[#allocation2 + $0x8]]
    %s585 = sld [smem:[#allocation2 + $0x9]]
    %v587 = vsel %vm56, %v571, 0
    %v590 = vsel %vm56, %v572, 0
    %592 = vmatpush.msra.mxu0 0.0
    %593 = vmatpush.msra.mxu0 0.0
    %594 = vmatpush.msra.mxu0 0.0
    %595 = vmatpush.msra.mxu0 0.0
    %596 = vmatpush.msra.mxu0 0.0
    %597 = vmatpush.msra.mxu0 0.0
    %598 = vmatpush.msra.mxu0 0.0
    %599 = vmatpush.msra.mxu0 0.0
    %600 = vmatpush.msra.mxu0 0.0
    %601 = vmatpush.msra.mxu0 0.0
    %602 = vmatpush.msra.mxu0 0.0
    %603 = vmatpush.msra.mxu0 0.0
    %604 = vmatpush.msra.mxu0 %v576
    %605 = vmatpush.msra.mxu0 %v575
    %606 = vmatpush.msra.mxu0 %v574
    %607 = vmatpush.msra.mxu0 %v573
    %608 = vmatmul.f32.gmra.mxu0 %v587
    %v609 = vpop.f32.mrf.mxu0
    %v610 = vadd.f32 0.0, %v609
    %611 = vmatmul.f32.gmra.mxu0 %v590
    %v612 = vpop.f32.mrf.mxu0
    %v613 = vadd.f32 0.0, %v612
    %614 = vdwg.mxu0
    %v616 = vsel %vm56, %v581, 0
    %v619 = vsel %vm56, %v582, 0
    %v622 = vsel %vm56, %v610, 0
    %v625 = vsel %vm56, %v613, 0
    %627 = vmatpush.xpose.msra.mxu0 0.0
    %628 = vmatpush.xpose.msra.mxu0 0.0
    %629 = vmatpush.xpose.msra.mxu0 0.0
    %630 = vmatpush.xpose.msra.mxu0 0.0
    %631 = vmatpush.xpose.msra.mxu0 0.0
    %632 = vmatpush.xpose.msra.mxu0 0.0
    %633 = vmatpush.xpose.msra.mxu0 0.0
    %634 = vmatpush.xpose.msra.mxu0 0.0
    %635 = vmatpush.xpose.msra.mxu0 0.0
    %636 = vmatpush.xpose.msra.mxu0 0.0
    %637 = vmatpush.xpose.msra.mxu0 0.0
    %638 = vmatpush.xpose.msra.mxu0 0.0
    %639 = vmatpush.xpose.msra.mxu0 0.0
    %640 = vmatpush.xpose.msra.mxu0 0.0
    %641 = vmatpush.xpose.msra.mxu0 %v625
    %642 = vmatpush.xpose.msra.mxu0 %v622
    %643 = vmatmul.f32.gmra.mxu0 %v616
    %v644 = vpop.f32.mrf.mxu0
    %v645 = vadd.f32 0.0, %v644
    %646 = vmatmul.f32.gmra.mxu0 %v619
    %v647 = vpop.f32.mrf.mxu0
    %v648 = vadd.f32 0.0, %v647
    %649 = vdwg.mxu0
    %650 = vmatpush.msra.mxu0 0.0
    %651 = vmatpush.msra.mxu0 0.0
    %652 = vmatpush.msra.mxu0 0.0
    %653 = vmatpush.msra.mxu0 0.0
    %654 = vmatpush.msra.mxu0 0.0
    %655 = vmatpush.msra.mxu0 0.0
    %656 = vmatpush.msra.mxu0 0.0
    %657 = vmatpush.msra.mxu0 0.0
    %658 = vmatpush.msra.mxu0 0.0
    %659 = vmatpush.msra.mxu0 0.0
    %660 = vmatpush.msra.mxu0 0.0
    %661 = vmatpush.msra.mxu0 0.0
    %662 = vmatpush.msra.mxu0 %v580
    %663 = vmatpush.msra.mxu0 %v579
    %664 = vmatpush.msra.mxu0 %v578
    %665 = vmatpush.msra.mxu0 %v577
    %666 = vmatmul.f32.gmra.mxu0 %v622
    %v667 = vpop.f32.mrf.mxu0
    %v668 = vadd.f32 %v645, %v667
    %669 = vmatmul.f32.gmra.mxu0 %v625
    %v670 = vpop.f32.mrf.mxu0
    %v671 = vadd.f32 %v648, %v670
    %672 = vdwg.mxu0
    %v673 = vstv %s584
    %v674 = vmul.f32 %v673, %v31
    %v675 = vmul.f32 %v673, %v32
    %v676 = vstv %s585
    %v677 = vmul.f32 %v676, %v33
    %v678 = vmul.f32 %v676, %v34
    %v679 = vadd.f32 %v674, %v677
    %v680 = vadd.f32 %v675, %v678
    %v681 = vadd.f32 %v668, %v679
    %v682 = vadd.f32 %v671, %v680
    %vm683 = vcmp.ge.f32.partialorder %v681, 0.0
    %vm684 = vcmp.ge.f32.partialorder %v682, 0.0
    %v685 = vmul.f32 %v681, 0.2
    %v686 = vmul.f32 %v682, 0.2
    %v687 = vsel %vm683, %v681, %v685
    %v688 = vsel %vm684, %v682, %v686
    %v689 = vsel %vm38, %v687, -1e+30
    %v690 = vsel %vm39, %v688, -1e+30
    %v691 = vsel %vm162, %v689, -inf
    %692 = vmax.xlane.f32.xlu0 %v691
    %v693 = vpop.xlane.xlu0 %692
    %v694 = vsel %vm162, %v690, -inf
    %695 = vmax.xlane.f32.xlu0 %v694
    %v696 = vpop.xlane.xlu0 %695
    %v697 = vsub.f32 %v689, %v693
    %v698 = vsub.f32 %v690, %v696
    %v699 = vmul.f32 %v697, 1.442695
    %v700 = vpow.pop %v699
    %v701 = vmul.f32 %v698, 1.442695
    %v702 = vpow.pop %v701
    %v703 = vsel %vm162, %v700, 0.0
    %704 = vadd.xlane.f32.xlu0 %v703
    %v705 = vpop.xlane.xlu0 %704
    %v706 = vsel %vm162, %v702, 0.0
    %707 = vadd.xlane.f32.xlu0 %v706
    %v708 = vpop.xlane.xlu0 %707
    %v709 = vrcp.pop %v705
    %v710 = vrcp.pop %v708
    %v711 = vmul.f32 %v700, %v709
    %v712 = vmul.f32 %v702, %v710
    %v714 = vsel %vm162, %v711, 0
    %v717 = vsel %vm162, %v712, 0
    %719 = vmatpush.msra.mxu0 0.0
    %720 = vmatpush.msra.mxu0 0.0
    %721 = vmatpush.msra.mxu0 0.0
    %722 = vmatpush.msra.mxu0 0.0
    %723 = vmatpush.msra.mxu0 0.0
    %724 = vmatpush.msra.mxu0 0.0
    %725 = vmatpush.msra.mxu0 0.0
    %726 = vmatpush.msra.mxu0 0.0
    %727 = vmatpush.msra.mxu0 0.0
    %728 = vmatpush.msra.mxu0 0.0
    %729 = vmatpush.msra.mxu0 0.0
    %730 = vmatpush.msra.mxu0 0.0
    %731 = vmatpush.msra.mxu0 0.0
    %732 = vmatpush.msra.mxu0 0.0
    %733 = vmatpush.msra.mxu0 %v613
    %734 = vmatpush.msra.mxu0 %v610
    %735 = vmatmul.f32.gmra.mxu0 %v714
    %v736 = vpop.f32.mrf.mxu0
    %v737 = vadd.f32 0.0, %v736
    %738 = vmatmul.f32.gmra.mxu0 %v717
    %v739 = vpop.f32.mrf.mxu0
    %v740 = vadd.f32 0.0, %v739
    %741 = vdwg.mxu0
    %v742 = vsel %vm42, %v610, %v737
    %v743 = vsel %vm42, %v613, %v740
    %v744 = vperm.slane %v583, 0
    %v745 = vadd.f32 %v742, %v744
    %v746 = vadd.f32 %v743, %v744
    %v747 = vmax.f32 %v745, 0.0
    %v748 = vmax.f32 %v746, 0.0
    %v749 = vld [vmem:[%s1 + $0x160] sm:$0x1]
    %v751 = vsel %vm56, %v749, 0
    %v754 = vsel %vm56, %v747, 0
    %v757 = vsel %vm56, %v748, 0
    %759 = vmatpush.xpose.msra.mxu0 0.0
    %760 = vmatpush.xpose.msra.mxu0 0.0
    %761 = vmatpush.xpose.msra.mxu0 0.0
    %762 = vmatpush.xpose.msra.mxu0 0.0
    %763 = vmatpush.xpose.msra.mxu0 0.0
    %764 = vmatpush.xpose.msra.mxu0 0.0
    %765 = vmatpush.xpose.msra.mxu0 0.0
    %766 = vmatpush.xpose.msra.mxu0 0.0
    %767 = vmatpush.xpose.msra.mxu0 0.0
    %768 = vmatpush.xpose.msra.mxu0 0.0
    %769 = vmatpush.xpose.msra.mxu0 0.0
    %770 = vmatpush.xpose.msra.mxu0 0.0
    %771 = vmatpush.xpose.msra.mxu0 0.0
    %772 = vmatpush.xpose.msra.mxu0 0.0
    %773 = vmatpush.xpose.msra.mxu0 %v757
    %774 = vmatpush.xpose.msra.mxu0 %v754
    %775 = vmatmul.f32.gmra.mxu0 %v751
    %v776 = vpop.f32.mrf.mxu0
    %v777 = vadd.f32 0.0, %v776
    %778 = vdwg.mxu0
    %vm779 = vcmask 15360
    %v781 = vsel %vm779, %v35, 0
    %v784 = vsel %vm779, %v36, 0
    %vm786 = vcmask 1041408
    %v788 = vsel %vm786, %v37, 0
    %790 = vmatpush.msra.mxu0 0.0
    %791 = vmatpush.msra.mxu0 0.0
    %792 = vmatpush.msra.mxu0 0.0
    %793 = vmatpush.msra.mxu0 0.0
    %794 = vmatpush.msra.mxu0 0.0
    %795 = vmatpush.msra.mxu0 0.0
    %796 = vmatpush.msra.mxu0 0.0
    %797 = vmatpush.msra.mxu0 0.0
    %798 = vmatpush.msra.mxu0 0.0
    %799 = vmatpush.msra.mxu0 0.0
    %800 = vmatpush.msra.mxu0 0.0
    %801 = vmatpush.msra.mxu0 0.0
    %802 = vmatpush.msra.mxu0 0.0
    %803 = vmatpush.msra.mxu0 0.0
    %804 = vmatpush.msra.mxu0 0.0
    %805 = vmatpush.msra.mxu0 %v788
    %806 = vmatmul.f32.gmra.mxu0 %v781
    %v807 = vpop.f32.mrf.mxu0
    %v808 = vadd.f32 0.0, %v807
    %809 = vmatmul.f32.gmra.mxu0 %v784
    %v810 = vpop.f32.mrf.mxu0
    %v811 = vadd.f32 0.0, %v810
    %812 = vdwg.mxu0
    %vm813 = vcmp.gt.f32.partialorder %v808, 0.0
    %vm814 = vcmp.gt.f32.partialorder %v811, 0.0
    %v815 = vperm.slane %v777, 0
    %v816 = vsel %vm813, %v815, -1e+30
    %v817 = vsel %vm814, %v815, -1e+30
    %v818 = vsel %vm162, %v816, -inf
    %819 = vmax.xlane.f32.xlu0 %v818
    %v820 = vpop.xlane.xlu0 %819
    %v821 = vsel %vm162, %v817, -inf
    %822 = vmax.xlane.f32.xlu0 %v821
    %v823 = vpop.xlane.xlu0 %822
    %v824 = vsub.f32 %v816, %v820
    %v825 = vsub.f32 %v817, %v823
    %v826 = vmul.f32 %v824, 1.442695
    %v827 = vpow.pop %v826
    %v828 = vmul.f32 %v825, 1.442695
    %v829 = vpow.pop %v828
    %v830 = vsel %vm162, %v827, 0.0
    %831 = vadd.xlane.f32.xlu0 %v830
    %v832 = vpop.xlane.xlu0 %831
    %v833 = vsel %vm162, %v829, 0.0
    %834 = vadd.xlane.f32.xlu0 %v833
    %v835 = vpop.xlane.xlu0 %834
    %v836 = vrcp.pop %v832
    %v837 = vrcp.pop %v835
    %v838 = vmul.f32 %v827, %v836
    %v839 = vmul.f32 %v829, %v837
    %v841 = vsel %vm162, %v838, 0
    %v844 = vsel %vm162, %v839, 0
    %846 = vmatpush.msra.mxu0 0.0
    %847 = vmatpush.msra.mxu0 0.0
    %848 = vmatpush.msra.mxu0 0.0
    %849 = vmatpush.msra.mxu0 0.0
    %850 = vmatpush.msra.mxu0 0.0
    %851 = vmatpush.msra.mxu0 0.0
    %852 = vmatpush.msra.mxu0 0.0
    %853 = vmatpush.msra.mxu0 0.0
    %854 = vmatpush.msra.mxu0 0.0
    %855 = vmatpush.msra.mxu0 0.0
    %856 = vmatpush.msra.mxu0 0.0
    %857 = vmatpush.msra.mxu0 0.0
    %858 = vmatpush.msra.mxu0 0.0
    %859 = vmatpush.msra.mxu0 0.0
    %860 = vmatpush.msra.mxu0 %v748
    %861 = vmatpush.msra.mxu0 %v747
    %862 = vmatmul.f32.gmra.mxu0 %v841
    %v863 = vpop.f32.mrf.mxu0
    %v864 = vadd.f32 0.0, %v863
    %865 = vmatmul.f32.gmra.mxu0 %v844
    %v866 = vpop.f32.mrf.mxu0
    %v867 = vadd.f32 0.0, %v866
    %868 = vdwg.mxu0
    %v869 = vsel %vm162, %v37, 0
    %871 = vmatpush.msra.mxu0 0.0
    %872 = vmatpush.msra.mxu0 0.0
    %873 = vmatpush.msra.mxu0 0.0
    %874 = vmatpush.msra.mxu0 0.0
    %875 = vmatpush.msra.mxu0 0.0
    %876 = vmatpush.msra.mxu0 0.0
    %877 = vmatpush.msra.mxu0 0.0
    %878 = vmatpush.msra.mxu0 0.0
    %879 = vmatpush.msra.mxu0 0.0
    %880 = vmatpush.msra.mxu0 0.0
    %881 = vmatpush.msra.mxu0 0.0
    %882 = vmatpush.msra.mxu0 0.0
    %883 = vmatpush.msra.mxu0 0.0
    %884 = vmatpush.msra.mxu0 0.0
    %885 = vmatpush.msra.mxu0 %v867
    %886 = vmatpush.msra.mxu0 %v864
    %887 = vmatmul.f32.gmra.mxu0 %v869
    %v888 = vpop.f32.mrf.mxu0
    %v889 = vadd.f32 0.0, %v888
    %890 = vdwg.mxu0
    %v891 = vmul.f32 %v889, 0.125
    %v892 = vld [vmem:[%s1 + $0x168] sm:$0xff]
    %v893 = vld [vmem:[%s1 + $0x170] sm:$0xff]
    %v894 = vld [vmem:[%s1 + $0x178] sm:$0xff]
    %v895 = vld [vmem:[%s1 + $0x180] sm:$0xff]
    %v896 = vld [vmem:[%s1 + $0x188] sm:$0xff]
    %v897 = vld [vmem:[%s1 + $0x190] sm:$0xff]
    %v898 = vld [vmem:[%s1 + $0x198] sm:$0xff]
    %v899 = vld [vmem:[%s1 + $0x1a0] sm:$0xff]
    %v900 = vld [vmem:[%s1 + $0x1a8] sm:$0x1]
    %v901 = vld [vmem:[%s1 + $0x1b0] sm:$0x1]
    %v903 = vsel %vm56, %v864, 0
    %v906 = vsel %vm56, %v867, 0
    %908 = vmatpush.msra.mxu0 0.0
    %909 = vmatpush.msra.mxu0 0.0
    %910 = vmatpush.msra.mxu0 0.0
    %911 = vmatpush.msra.mxu0 0.0
    %912 = vmatpush.msra.mxu0 0.0
    %913 = vmatpush.msra.mxu0 0.0
    %914 = vmatpush.msra.mxu0 0.0
    %915 = vmatpush.msra.mxu0 0.0
    %916 = vmatpush.msra.mxu0 0.0
    %917 = vmatpush.msra.mxu0 0.0
    %918 = vmatpush.msra.mxu0 0.0
    %919 = vmatpush.msra.mxu0 0.0
    %920 = vmatpush.msra.mxu0 %v899
    %921 = vmatpush.msra.mxu0 %v898
    %922 = vmatpush.msra.mxu0 %v897
    %923 = vmatpush.msra.mxu0 %v896
    %924 = vmatmul.f32.gmra.mxu0 %v903
    %v925 = vpop.f32.mrf.mxu0
    %v926 = vadd.f32 0.0, %v925
    %927 = vmatmul.f32.gmra.mxu0 %v906
    %v928 = vpop.f32.mrf.mxu0
    %v929 = vadd.f32 0.0, %v928
    %930 = vdwg.mxu0
    %931 = vmatpush.msra.mxu0 0.0
    %932 = vmatpush.msra.mxu0 0.0
    %933 = vmatpush.msra.mxu0 0.0
    %934 = vmatpush.msra.mxu0 0.0
    %935 = vmatpush.msra.mxu0 0.0
    %936 = vmatpush.msra.mxu0 0.0
    %937 = vmatpush.msra.mxu0 0.0
    %938 = vmatpush.msra.mxu0 0.0
    %939 = vmatpush.msra.mxu0 0.0
    %940 = vmatpush.msra.mxu0 0.0
    %941 = vmatpush.msra.mxu0 0.0
    %942 = vmatpush.msra.mxu0 0.0
    %943 = vmatpush.msra.mxu0 %v895
    %944 = vmatpush.msra.mxu0 %v894
    %945 = vmatpush.msra.mxu0 %v893
    %946 = vmatpush.msra.mxu0 %v892
    %947 = vmatmul.f32.gmra.mxu0 %v754
    %v948 = vpop.f32.mrf.mxu0
    %v949 = vadd.f32 %v926, %v948
    %950 = vmatmul.f32.gmra.mxu0 %v757
    %v951 = vpop.f32.mrf.mxu0
    %v952 = vadd.f32 %v929, %v951
    %953 = vdwg.mxu0
    %v954 = vperm.slane %v900, 0
    %v955 = vadd.f32 %v949, %v954
    %v956 = vadd.f32 %v952, %v954
    %v957 = vmax.f32 %v955, 0.0
    %v958 = vmax.f32 %v956, 0.0
    %s959 = sld [smem:[#allocation2]]
    %v960 = vstv %s959
    %v962 = vsel %vm56, %v901, 0
    %v965 = vsel %vm56, %v957, 0
    %v968 = vsel %vm56, %v958, 0
    %970 = vmatpush.xpose.msra.mxu0 0.0
    %971 = vmatpush.xpose.msra.mxu0 0.0
    %972 = vmatpush.xpose.msra.mxu0 0.0
    %973 = vmatpush.xpose.msra.mxu0 0.0
    %974 = vmatpush.xpose.msra.mxu0 0.0
    %975 = vmatpush.xpose.msra.mxu0 0.0
    %976 = vmatpush.xpose.msra.mxu0 0.0
    %977 = vmatpush.xpose.msra.mxu0 0.0
    %978 = vmatpush.xpose.msra.mxu0 0.0
    %979 = vmatpush.xpose.msra.mxu0 0.0
    %980 = vmatpush.xpose.msra.mxu0 0.0
    %981 = vmatpush.xpose.msra.mxu0 0.0
    %982 = vmatpush.xpose.msra.mxu0 0.0
    %983 = vmatpush.xpose.msra.mxu0 0.0
    %984 = vmatpush.xpose.msra.mxu0 %v968
    %985 = vmatpush.xpose.msra.mxu0 %v965
    %986 = vmatmul.f32.gmra.mxu0 %v962
    %v987 = vpop.f32.mrf.mxu0
    %v988 = vadd.f32 %v960, %v987
    %989 = vdwg.mxu0
    %v990 = vld [vmem:[%s1 + $0x1b8] sm:$0xff]
    %v991 = vld [vmem:[%s1 + $0x1c0] sm:$0xff]
    %v992 = vld [vmem:[%s1 + $0x1c8] sm:$0xff]
    %v993 = vld [vmem:[%s1 + $0x1d0] sm:$0xff]
    %v994 = vld [vmem:[%s1 + $0x1d8] sm:$0x1]
    %v995 = vld [vmem:[%s1 + $0x1e0] sm:$0x1]
    %v996 = vperm.slane %v994, 0
    %v998 = vsel %vm56, %v891, 0
    %1000 = vmatpush.msra.mxu0 0.0
    %1001 = vmatpush.msra.mxu0 0.0
    %1002 = vmatpush.msra.mxu0 0.0
    %1003 = vmatpush.msra.mxu0 0.0
    %1004 = vmatpush.msra.mxu0 0.0
    %1005 = vmatpush.msra.mxu0 0.0
    %1006 = vmatpush.msra.mxu0 0.0
    %1007 = vmatpush.msra.mxu0 0.0
    %1008 = vmatpush.msra.mxu0 0.0
    %1009 = vmatpush.msra.mxu0 0.0
    %1010 = vmatpush.msra.mxu0 0.0
    %1011 = vmatpush.msra.mxu0 0.0
    %1012 = vmatpush.msra.mxu0 %v993
    %1013 = vmatpush.msra.mxu0 %v992
    %1014 = vmatpush.msra.mxu0 %v991
    %1015 = vmatpush.msra.mxu0 %v990
    %1016 = vmatmul.f32.gmra.mxu0 %v998
    %v1017 = vpop.f32.mrf.mxu0
    %v1018 = vadd.f32 %v996, %v1017
    %1019 = vdwg.mxu0
    %v1020 = vmax.f32 %v1018, 0.0
    %s1021 = sld [smem:[#allocation2 + $0x1]]
    %v1022 = vstv %s1021
    %v1024 = vsel %vm162, %v995, 0
    %v1027 = vsel %vm162, %v1020, 0
    %1029 = vmatpush.xpose.msra.mxu0 0.0
    %1030 = vmatpush.xpose.msra.mxu0 0.0
    %1031 = vmatpush.xpose.msra.mxu0 0.0
    %1032 = vmatpush.xpose.msra.mxu0 0.0
    %1033 = vmatpush.xpose.msra.mxu0 0.0
    %1034 = vmatpush.xpose.msra.mxu0 0.0
    %1035 = vmatpush.xpose.msra.mxu0 0.0
    %1036 = vmatpush.xpose.msra.mxu0 0.0
    %1037 = vmatpush.xpose.msra.mxu0 0.0
    %1038 = vmatpush.xpose.msra.mxu0 0.0
    %1039 = vmatpush.xpose.msra.mxu0 0.0
    %1040 = vmatpush.xpose.msra.mxu0 0.0
    %1041 = vmatpush.xpose.msra.mxu0 0.0
    %1042 = vmatpush.xpose.msra.mxu0 0.0
    %1043 = vmatpush.xpose.msra.mxu0 0.0
    %1044 = vmatpush.xpose.msra.mxu0 %v1027
    %1045 = vmatmul.f32.gmra.mxu0 %v1024
    %v1046 = vpop.f32.mrf.mxu0
    %v1047 = vadd.f32 %v1022, %v1046
    %1048 = vdwg.mxu0
    %vm1049 = vcmask 122880
    %1050 = vst.msk [vmem:[%s3] sm:$0x1] %vm1049, %v988
    %vm1051 = vcmask 8192
    %1052 = vst.msk [vmem:[%s3 + $0x1] sm:$0x1] %vm1051, %v1047
    // Predicated region
    $region18: #{hybrid_network_global.1} parent=1 // pred_check
      _
    $region19: #{hybrid_network_global.1} parent=1 // pred_check_branch
      %1054 = sbr.rel (0) target = $region21
    $region20: #{hybrid_network_global.1} parent=1 // pred_region
      _
    $region21: #{hybrid_network_global.1} parent=1 // pred_fallthru
      _
    // Predicated region
    $region22: #{hybrid_network_global.1} parent=1 // pred_check
      _
    $region23: #{hybrid_network_global.1} parent=1 // pred_check_branch
      %1056 = sbr.rel (0) target = $region25
    $region24: #{hybrid_network_global.1} parent=1 // pred_region
      _
    $region25: #{hybrid_network_global.1} parent=1 // pred_fallthru
      _
    %1057 = vsyncpa [#allocation3], 1

</llo_original>
